<compile_context>
chip_gen: v6e
topology: v6e:2x2x1
jax: 0.10.0
libtpu: 0.0.40
codegen_flags: <defaults>
</compile_context>

<pallas_src>
import functools

import numpy as np
import jax
import jax.numpy as jnp
from jax.experimental import pallas as pl
from jax.experimental.pallas import tpu as pltpu


# ---------------------------------------------------------------------------
# Flattened-spatial layouts used by the kernel (per sample, channels x lanes):
#   q-layout : length Lq = (H+2)*(W+2)   zero-padded image, row-major flat
#   p-layout : length P  = H*(W+2) - 2   conv-output positions, p = i*(W+2)+j
#   e-layout : length Le = Lq + 2*(W+3)  q-layout with (W+3) extra zeros both
#                                        ends (halo so conv1 needs no re-pad)
# A 3x3 conv at offset (dy,dx) is a static lane slice [dy*(W+2)+dx : ... + L];
# stacking the 9 slices over channels gives the (9*Cin, L) patch matrix for a
# single MXU matmul.  The valid-position mask both implements the per-(n,c)
# instance-norm statistics and re-zeroes the padding ring for the next conv.
# ---------------------------------------------------------------------------
def _convblock_pool_kernel(x_ref, w1_ref, w2_ref, mq_ref, mp_ref, crop_ref,
                           pool_ref, stack_ref, pooled_ref, *, Wp, Lq, P,
                           inv_hw):
    def conv_instnorm(src, w_mat, out_len, mask):
        # src: (c_in_pad, src_len) f32, zero at padding positions.
        # w_mat: (c_out_pad, 9*c_in_pad) bf16.  out_len = src_len - 2*Wp - 2.
        shifted = [src[:, dy * Wp + dx: dy * Wp + dx + out_len]
                   for dy in range(3) for dx in range(3)]      # 9 x (cin, L)
        patches = jnp.concatenate(shifted, axis=0).astype(jnp.bfloat16)
        y = jnp.dot(w_mat, patches,
                    preferred_element_type=jnp.float32)        # (cout, L) f32
        # InstanceNorm2d(eps=1e-5, affine=False) over the valid H*W positions.
        mean = jnp.sum(y * mask, axis=-1, keepdims=True) * inv_hw
        cen = (y - mean) * mask                                # 0 outside valid
        var = jnp.sum(cen * cen, axis=-1, keepdims=True) * inv_hw
        # Dropout2d is identity in eval mode.
        return cen * jax.lax.rsqrt(var + 1e-5)

    mq = mq_ref[...]                                           # (1, Lq)
    mp = mp_ref[...]                                           # (1, P)

    y1 = conv_instnorm(x_ref[0], w1_ref[...], Lq, mq)          # (cout_p, Lq)
    y2 = conv_instnorm(y1, w2_ref[...], P, mp)                 # (cout_p, P)

    # Skip-connection output (dense H*W on lanes) and 2x2 avg-pool emitted
    # directly in the next layer's padded/flattened input layout, both via
    # exact f32 selection matmuls on the MXU.
    stack_ref[0] = jnp.dot(y2, crop_ref[...],
                           preferred_element_type=jnp.float32)
    pooled_ref[0] = jnp.dot(y2, pool_ref[...],
                            preferred_element_type=jnp.float32)


def _round_up(x, m):
    return (x + m - 1) // m * m


def _make_layer(N, H, W, w1_oihw, w2_oihw):
    c_out, c_in = int(w1_oihw.shape[0]), int(w1_oihw.shape[1])
    assert H % 2 == 0 and W % 2 == 0
    Wp = W + 2
    Lq = (H + 2) * Wp
    P = H * Wp - 2
    Le = Lq + 2 * Wp + 2
    HW = H * W
    Hn, Wn = H // 2, W // 2
    Wpn = Wn + 2
    Lqn = (Hn + 2) * Wpn
    Len = Lqn + 2 * Wpn + 2          # e-layout length of the NEXT layer

    cip = _round_up(c_in, 8)         # sublane-aligned channel counts
    cop = _round_up(c_out, 8)

    # ---- constant masks / selection matrices (host numpy, baked as consts) --
    q = np.arange(Lq)
    mask_q = (((q // Wp) >= 1) & ((q // Wp) <= H)
              & ((q % Wp) >= 1) & ((q % Wp) <= W)).astype(np.float32)[None, :]
    p = np.arange(P)
    mask_p = ((p % Wp) < W).astype(np.float32)[None, :]

    ii, jj = np.meshgrid(np.arange(H), np.arange(W), indexing="ij")
    crop = np.zeros((P, HW), np.float32)
    crop[ii * Wp + jj, ii * W + jj] = 1.0                       # p -> dense HW

    pool = np.zeros((P, Len), np.float32)
    i2, j2 = np.meshgrid(np.arange(Hn), np.arange(Wn), indexing="ij")
    dst = (i2 + 1) * Wpn + (j2 + 1) + (Wpn + 1)                 # next e-layout
    for a in (0, 1):
        for b in (0, 1):
            pool[(2 * i2 + a) * Wp + (2 * j2 + b), dst] = 0.25

    # ---- weights: OIHW -> channel-padded (cop, 9*cip) bf16 matmul matrices --
    w1p = jnp.zeros((cop, cip, 3, 3), jnp.float32).at[:c_out, :c_in].set(w1_oihw)
    w2p = jnp.zeros((cop, cop, 3, 3), jnp.float32).at[:c_out, :c_out].set(w2_oihw)
    w1m = w1p.transpose(0, 2, 3, 1).reshape(cop, 9 * cip).astype(jnp.bfloat16)
    w2m = w2p.transpose(0, 2, 3, 1).reshape(cop, 9 * cop).astype(jnp.bfloat16)

    kernel = functools.partial(_convblock_pool_kernel,
                               Wp=Wp, Lq=Lq, P=P, inv_hw=1.0 / HW)

    flops = 2 * N * cop * (Lq * 9 * cip + P * 9 * cop + P * (HW + Len))
    bytes_accessed = (4 * N * (cip * Le + cop * (HW + Len))
                      + 2 * 9 * cop * (cip + cop)
                      + 4 * (Lq + P * (1 + HW + Len)))

    call = pl.pallas_call(
        kernel,
        out_shape=(jax.ShapeDtypeStruct((N, cop, HW), jnp.float32),
                   jax.ShapeDtypeStruct((N, cop, Len), jnp.float32)),
        grid=(N,),
        in_specs=[
            pl.BlockSpec((1, cip, Le), lambda n: (n, 0, 0)),    # activation
            pl.BlockSpec((cop, 9 * cip), lambda n: (0, 0)),     # conv1 weight
            pl.BlockSpec((cop, 9 * cop), lambda n: (0, 0)),     # conv2 weight
            pl.BlockSpec((1, Lq), lambda n: (0, 0)),            # conv1 mask
            pl.BlockSpec((1, P), lambda n: (0, 0)),             # conv2 mask
            pl.BlockSpec((P, HW), lambda n: (0, 0)),            # crop matrix
            pl.BlockSpec((P, Len), lambda n: (0, 0)),           # pool matrix
        ],
        out_specs=(
            pl.BlockSpec((1, cop, HW), lambda n: (n, 0, 0)),    # skip / stack
            pl.BlockSpec((1, cop, Len), lambda n: (n, 0, 0)),   # pooled
        ),
        compiler_params=pltpu.CompilerParams(
            dimension_semantics=("parallel",)),
        cost_estimate=pl.CostEstimate(flops=int(flops),
                                      transcendentals=int(2 * N * cop),
                                      bytes_accessed=int(bytes_accessed)),
    )
    consts = (w1m, w2m, jnp.asarray(mask_q), jnp.asarray(mask_p),
              jnp.asarray(crop), jnp.asarray(pool))
    return dict(call=call, consts=consts, c_out=c_out, H=H, W=W,
                Hn=Hn, Wn=Wn, Wpn=Wpn, Lqn=Lqn)


def build_encoder(params, N, H, W, in_chans):
    """Returns forward(x_nchw) -> (stack, pooled), matching Encoder.forward."""
    layers = []
    h, w_sp = H, W
    for w1, w2 in params:
        layers.append(_make_layer(N, h, w_sp, w1, w2))
        h, w_sp = h // 2, w_sp // 2

    cip0 = _round_up(in_chans, 8)
    Wp0 = W + 2

    def forward(x_nchw):
        n = x_nchw.shape[0]
        # NCHW -> channel-padded, spatially zero-padded, flattened e-layout.
        xq = jnp.pad(x_nchw, ((0, 0), (0, cip0 - in_chans), (1, 1), (1, 1)))
        xe = jnp.pad(xq.reshape(n, cip0, (H + 2) * Wp0),
                     ((0, 0), (0, 0), (Wp0 + 1, Wp0 + 1)))
        stack = []
        for lyr in layers:
            stack_flat, xe = lyr["call"](xe, *lyr["consts"])
            stack.append(stack_flat[:, :lyr["c_out"], :]
                         .reshape(n, lyr["c_out"], lyr["H"], lyr["W"]))
        last = layers[-1]
        wpn = last["Wpn"]
        pooled = xe[:, :last["c_out"], wpn + 1: wpn + 1 + last["Lqn"]]
        pooled = pooled.reshape(n, last["c_out"], last["Hn"] + 2,
                                wpn)[:, :, 1:-1, 1:-1]
        return stack, pooled

    return forward


def init_encoder_params(key, num_pool_layers, in_chans, chans):
    """Deterministic synthetic weights, same shapes as the PyTorch module."""
    params = []
    ch_in, ch_out = in_chans, chans
    for _ in range(num_pool_layers):
        key, k1, k2 = jax.random.split(key, 3)
        w1 = 0.1 * jax.random.normal(k1, (ch_out, ch_in, 3, 3), jnp.float32)
        w2 = 0.1 * jax.random.normal(k2, (ch_out, ch_out, 3, 3), jnp.float32)
        params.append((w1, w2))
        ch_in, ch_out = ch_out, ch_out * 2
    return params


# ---------------------------------------------------------------------------
# Pure-JAX references.  `compute_dtype=bf16` mirrors the kernel's precision
# recipe (bf16 MXU operands, f32 accumulation + f32 instance-norm statistics);
# `compute_dtype=f32` is the exact semantics of the PyTorch module.
# ---------------------------------------------------------------------------
def _ref_conv_in(x_nchw, w_oihw, compute_dtype):
    y = jax.lax.conv_general_dilated(
        x_nchw.astype(compute_dtype), w_oihw.astype(compute_dtype), (1, 1),
        "SAME", dimension_numbers=("NCHW", "OIHW", "NCHW"),
        preferred_element_type=jnp.float32)
    mean = jnp.mean(y, axis=(2, 3), keepdims=True)
    var = jnp.mean((y - mean) ** 2, axis=(2, 3), keepdims=True)
    return (y - mean) * jax.lax.rsqrt(var + 1e-5)


def _ref_encoder(x_nchw, params, compute_dtype):
    out = x_nchw
    stack = []
    for w1, w2 in params:
        out = _ref_conv_in(out, w1, compute_dtype)
        out = _ref_conv_in(out, w2, compute_dtype)
        stack.append(out)
        n, c, h, w = out.shape
        out = out.reshape(n, c, h // 2, 2, w // 2, 2).mean(axis=(3, 5))
    return stack, out


# ---------------------------------------------------------------------------
if __name__ == "__main__":
    num_pool_layers = 2
    in_chans = 4
    chans = 8
    N, H, W = 2, 16, 16
    drop_prob = 0.0  # Dropout2d is identity in eval mode anyway

    key = jax.random.PRNGKey(0)
    kx, kp = jax.random.split(key)
    x = jax.random.normal(kx, (N, in_chans, H, W), jnp.float32)   # NCHW input
    params = init_encoder_params(kp, num_pool_layers, in_chans, chans)

    forward = jax.jit(build_encoder(params, N, H, W, in_chans))
    stack, pooled = jax.block_until_ready(forward(x))

    # Tight check against a reference with the same precision recipe
    # (bf16 matmul operands, f32 accumulation / statistics).
    ref_stack, ref_pooled = _ref_encoder(x, params, jnp.bfloat16)
    for s, rs in zip(stack, ref_stack):
        assert s.shape == rs.shape
        err = float(jnp.max(jnp.abs(s - rs)))
        assert err < 1e-2, err
    assert pooled.shape == ref_pooled.shape
    assert float(jnp.max(jnp.abs(pooled - ref_pooled))) < 1e-2

    # Loose sanity check against the exact f32 module semantics (difference is
    # only the deliberate bf16 MXU-input approximation).
    f32_stack, f32_pooled = _ref_encoder(x, params, jnp.float32)
    assert float(jnp.max(jnp.abs(pooled - f32_pooled))) < 2e-1
    for s, rs in zip(stack, f32_stack):
        assert float(jnp.max(jnp.abs(s - rs))) < 2e-1

    print("KERNEL_OK")
</pallas_src>

<mosaic_0001>
module attributes {stable_mosaic.version = 11 : i64} {
  func.func @_convblock_pool_kernel(%arg0: i32, %arg1: memref<1x8x362xf32, #tpu.memory_space<vmem>>, %arg2: memref<8x72xbf16, #tpu.memory_space<vmem>>, %arg3: memref<8x72xbf16, #tpu.memory_space<vmem>>, %arg4: memref<1x324xf32, #tpu.memory_space<vmem>>, %arg5: memref<1x286xf32, #tpu.memory_space<vmem>>, %arg6: memref<286x256xf32, #tpu.memory_space<vmem>>, %arg7: memref<286x122xf32, #tpu.memory_space<vmem>>, %arg8: memref<1x8x256xf32, #tpu.memory_space<vmem>>, %arg9: memref<1x8x122xf32, #tpu.memory_space<vmem>>) attributes {dimension_semantics = [#tpu.dimension_semantics<parallel>], iteration_bounds = array<i64: 2>, scalar_prefetch = 0 : i64, scratch_operands = 0 : i64, tpu.core_type = #tpu.core_type<tc>, window_params = [{transform_indices = @transform_0, window_bounds = array<i64: 1, 8, 362>}, {pipeline_mode = #tpu.pipeline_mode<synchronous>, transform_indices = @transform_1, window_bounds = array<i64: 8, 72>}, {pipeline_mode = #tpu.pipeline_mode<synchronous>, transform_indices = @transform_2, window_bounds = array<i64: 8, 72>}, {pipeline_mode = #tpu.pipeline_mode<synchronous>, transform_indices = @transform_3, window_bounds = array<i64: 1, 324>}, {pipeline_mode = #tpu.pipeline_mode<synchronous>, transform_indices = @transform_4, window_bounds = array<i64: 1, 286>}, {pipeline_mode = #tpu.pipeline_mode<synchronous>, transform_indices = @transform_5, window_bounds = array<i64: 286, 256>}, {pipeline_mode = #tpu.pipeline_mode<synchronous>, transform_indices = @transform_6, window_bounds = array<i64: 286, 122>}, {transform_indices = @transform_7, window_bounds = array<i64: 1, 8, 256>}, {transform_indices = @transform_8, window_bounds = array<i64: 1, 8, 122>}]} {
    %c0 = arith.constant 0 : index
    %c0_0 = arith.constant 0 : index
    %0 = vector.load %arg4[%c0, %c0_0] : memref<1x324xf32, #tpu.memory_space<vmem>>, vector<1x324xf32>
    %c0_1 = arith.constant 0 : index
    %c0_2 = arith.constant 0 : index
    %1 = vector.load %arg5[%c0_1, %c0_2] : memref<1x286xf32, #tpu.memory_space<vmem>>, vector<1x286xf32>
    %c0_3 = arith.constant 0 : index
    %c0_4 = arith.constant 0 : index
    %c0_5 = arith.constant 0 : index
    %2 = vector.load %arg1[%c0_3, %c0_4, %c0_5] : memref<1x8x362xf32, #tpu.memory_space<vmem>>, vector<1x8x362xf32>
    %3 = vector.shape_cast %2 : vector<1x8x362xf32> to vector<8x362xf32>
    %c0_6 = arith.constant 0 : index
    %c0_7 = arith.constant 0 : index
    %4 = vector.load %arg2[%c0_6, %c0_7] : memref<8x72xbf16, #tpu.memory_space<vmem>>, vector<8x72xbf16>
    %5 = vector.extract_strided_slice %3 {offsets = [0, 0], sizes = [8, 324], strides = [1, 1]} : vector<8x362xf32> to vector<8x324xf32>
    %6 = vector.extract_strided_slice %3 {offsets = [0, 1], sizes = [8, 324], strides = [1, 1]} : vector<8x362xf32> to vector<8x324xf32>
    %7 = vector.extract_strided_slice %3 {offsets = [0, 2], sizes = [8, 324], strides = [1, 1]} : vector<8x362xf32> to vector<8x324xf32>
    %8 = vector.extract_strided_slice %3 {offsets = [0, 18], sizes = [8, 324], strides = [1, 1]} : vector<8x362xf32> to vector<8x324xf32>
    %9 = vector.extract_strided_slice %3 {offsets = [0, 19], sizes = [8, 324], strides = [1, 1]} : vector<8x362xf32> to vector<8x324xf32>
    %10 = vector.extract_strided_slice %3 {offsets = [0, 20], sizes = [8, 324], strides = [1, 1]} : vector<8x362xf32> to vector<8x324xf32>
    %11 = vector.extract_strided_slice %3 {offsets = [0, 36], sizes = [8, 324], strides = [1, 1]} : vector<8x362xf32> to vector<8x324xf32>
    %12 = vector.extract_strided_slice %3 {offsets = [0, 37], sizes = [8, 324], strides = [1, 1]} : vector<8x362xf32> to vector<8x324xf32>
    %13 = vector.extract_strided_slice %3 {offsets = [0, 38], sizes = [8, 324], strides = [1, 1]} : vector<8x362xf32> to vector<8x324xf32>
    %14 = tpu.concatenate %5, %6, %7, %8, %9, %10, %11, %12, %13 in 0 : vector<8x324xf32>, vector<8x324xf32>, vector<8x324xf32>, vector<8x324xf32>, vector<8x324xf32>, vector<8x324xf32>, vector<8x324xf32>, vector<8x324xf32>, vector<8x324xf32> -> vector<72x324xf32>
    %15 = arith.truncf %14 : vector<72x324xf32> to vector<72x324xbf16>
    %cst = arith.constant dense<0.000000e+00> : vector<8x324xf32>
    %16 = tpu.matmul %4, %15, %cst {dimension_numbers = #tpu.dot_dimension_numbers<[1], [0], [0], [1], [0, 0, 1, 1], [], []>} : vector<8x72xbf16>, vector<72x324xbf16>, vector<8x324xf32> -> vector<8x324xf32>
    %17 = vector.broadcast %0 : vector<1x324xf32> to vector<8x324xf32>
    %18 = arith.mulf %16, %17 : vector<8x324xf32>
    %cst_8 = arith.constant dense<0.000000e+00> : vector<8xf32>
    %19 = vector.multi_reduction <add>, %18, %cst_8 [1] : vector<8x324xf32> to vector<8xf32>
    %20 = vector.shape_cast %19 : vector<8xf32> to vector<8x1xf32>
    %cst_9 = arith.constant 3.906250e-03 : f32
    %21 = vector.broadcast %cst_9 : f32 to vector<8x1xf32>
    %22 = arith.mulf %20, %21 : vector<8x1xf32>
    %23 = vector.broadcast %22 : vector<8x1xf32> to vector<8x324xf32>
    %24 = arith.subf %16, %23 : vector<8x324xf32>
    %25 = vector.broadcast %0 : vector<1x324xf32> to vector<8x324xf32>
    %26 = arith.mulf %24, %25 : vector<8x324xf32>
    %27 = arith.mulf %26, %26 : vector<8x324xf32>
    %cst_10 = arith.constant dense<0.000000e+00> : vector<8xf32>
    %28 = vector.multi_reduction <add>, %27, %cst_10 [1] : vector<8x324xf32> to vector<8xf32>
    %29 = vector.shape_cast %28 : vector<8xf32> to vector<8x1xf32>
    %cst_11 = arith.constant 3.906250e-03 : f32
    %30 = vector.broadcast %cst_11 : f32 to vector<8x1xf32>
    %31 = arith.mulf %29, %30 : vector<8x1xf32>
    %cst_12 = arith.constant 9.99999974E-6 : f32
    %32 = vector.broadcast %cst_12 : f32 to vector<8x1xf32>
    %33 = arith.addf %31, %32 : vector<8x1xf32>
    %34 = math.rsqrt %33 : vector<8x1xf32>
    %35 = vector.broadcast %34 : vector<8x1xf32> to vector<8x324xf32>
    %36 = arith.mulf %26, %35 : vector<8x324xf32>
    %c0_13 = arith.constant 0 : index
    %c0_14 = arith.constant 0 : index
    %37 = vector.load %arg3[%c0_13, %c0_14] : memref<8x72xbf16, #tpu.memory_space<vmem>>, vector<8x72xbf16>
    %38 = vector.extract_strided_slice %36 {offsets = [0, 0], sizes = [8, 286], strides = [1, 1]} : vector<8x324xf32> to vector<8x286xf32>
    %39 = vector.extract_strided_slice %36 {offsets = [0, 1], sizes = [8, 286], strides = [1, 1]} : vector<8x324xf32> to vector<8x286xf32>
    %40 = vector.extract_strided_slice %36 {offsets = [0, 2], sizes = [8, 286], strides = [1, 1]} : vector<8x324xf32> to vector<8x286xf32>
    %41 = vector.extract_strided_slice %36 {offsets = [0, 18], sizes = [8, 286], strides = [1, 1]} : vector<8x324xf32> to vector<8x286xf32>
    %42 = vector.extract_strided_slice %36 {offsets = [0, 19], sizes = [8, 286], strides = [1, 1]} : vector<8x324xf32> to vector<8x286xf32>
    %43 = vector.extract_strided_slice %36 {offsets = [0, 20], sizes = [8, 286], strides = [1, 1]} : vector<8x324xf32> to vector<8x286xf32>
    %44 = vector.extract_strided_slice %36 {offsets = [0, 36], sizes = [8, 286], strides = [1, 1]} : vector<8x324xf32> to vector<8x286xf32>
    %45 = vector.extract_strided_slice %36 {offsets = [0, 37], sizes = [8, 286], strides = [1, 1]} : vector<8x324xf32> to vector<8x286xf32>
    %46 = vector.extract_strided_slice %36 {offsets = [0, 38], sizes = [8, 286], strides = [1, 1]} : vector<8x324xf32> to vector<8x286xf32>
    %47 = tpu.concatenate %38, %39, %40, %41, %42, %43, %44, %45, %46 in 0 : vector<8x286xf32>, vector<8x286xf32>, vector<8x286xf32>, vector<8x286xf32>, vector<8x286xf32>, vector<8x286xf32>, vector<8x286xf32>, vector<8x286xf32>, vector<8x286xf32> -> vector<72x286xf32>
    %48 = arith.truncf %47 : vector<72x286xf32> to vector<72x286xbf16>
    %cst_15 = arith.constant dense<0.000000e+00> : vector<8x286xf32>
    %49 = tpu.matmul %37, %48, %cst_15 {dimension_numbers = #tpu.dot_dimension_numbers<[1], [0], [0], [1], [0, 0, 1, 1], [], []>} : vector<8x72xbf16>, vector<72x286xbf16>, vector<8x286xf32> -> vector<8x286xf32>
    %50 = vector.broadcast %1 : vector<1x286xf32> to vector<8x286xf32>
    %51 = arith.mulf %49, %50 : vector<8x286xf32>
    %cst_16 = arith.constant dense<0.000000e+00> : vector<8xf32>
    %52 = vector.multi_reduction <add>, %51, %cst_16 [1] : vector<8x286xf32> to vector<8xf32>
    %53 = vector.shape_cast %52 : vector<8xf32> to vector<8x1xf32>
    %cst_17 = arith.constant 3.906250e-03 : f32
    %54 = vector.broadcast %cst_17 : f32 to vector<8x1xf32>
    %55 = arith.mulf %53, %54 : vector<8x1xf32>
    %56 = vector.broadcast %55 : vector<8x1xf32> to vector<8x286xf32>
    %57 = arith.subf %49, %56 : vector<8x286xf32>
    %58 = vector.broadcast %1 : vector<1x286xf32> to vector<8x286xf32>
    %59 = arith.mulf %57, %58 : vector<8x286xf32>
    %60 = arith.mulf %59, %59 : vector<8x286xf32>
    %cst_18 = arith.constant dense<0.000000e+00> : vector<8xf32>
    %61 = vector.multi_reduction <add>, %60, %cst_18 [1] : vector<8x286xf32> to vector<8xf32>
    %62 = vector.shape_cast %61 : vector<8xf32> to vector<8x1xf32>
    %cst_19 = arith.constant 3.906250e-03 : f32
    %63 = vector.broadcast %cst_19 : f32 to vector<8x1xf32>
    %64 = arith.mulf %62, %63 : vector<8x1xf32>
    %cst_20 = arith.constant 9.99999974E-6 : f32
    %65 = vector.broadcast %cst_20 : f32 to vector<8x1xf32>
    %66 = arith.addf %64, %65 : vector<8x1xf32>
    %67 = math.rsqrt %66 : vector<8x1xf32>
    %68 = vector.broadcast %67 : vector<8x1xf32> to vector<8x286xf32>
    %69 = arith.mulf %59, %68 : vector<8x286xf32>
    %c0_21 = arith.constant 0 : index
    %c0_22 = arith.constant 0 : index
    %70 = vector.load %arg6[%c0_21, %c0_22] : memref<286x256xf32, #tpu.memory_space<vmem>>, vector<286x256xf32>
    %cst_23 = arith.constant dense<0.000000e+00> : vector<8x256xf32>
    %71 = tpu.matmul %69, %70, %cst_23 {dimension_numbers = #tpu.dot_dimension_numbers<[1], [0], [0], [1], [0, 0, 1, 1], [], []>} : vector<8x286xf32>, vector<286x256xf32>, vector<8x256xf32> -> vector<8x256xf32>
    %c0_24 = arith.constant 0 : index
    %c0_25 = arith.constant 0 : index
    %c0_26 = arith.constant 0 : index
    %72 = vector.load %arg8[%c0_24, %c0_25, %c0_26] : memref<1x8x256xf32, #tpu.memory_space<vmem>>, vector<1x8x256xf32>
    %73 = vector.shape_cast %72 : vector<1x8x256xf32> to vector<8x256xf32>
    %74 = vector.shape_cast %71 : vector<8x256xf32> to vector<1x8x256xf32>
    tpu.vector_store %arg8[%c0_24, %c0_25, %c0_26], %74 {strides = array<i32>} : memref<1x8x256xf32, #tpu.memory_space<vmem>>, vector<1x8x256xf32>,
    %c0_27 = arith.constant 0 : index
    %c0_28 = arith.constant 0 : index
    %75 = vector.load %arg7[%c0_27, %c0_28] : memref<286x122xf32, #tpu.memory_space<vmem>>, vector<286x122xf32>
    %cst_29 = arith.constant dense<0.000000e+00> : vector<8x122xf32>
    %76 = tpu.matmul %69, %75, %cst_29 {dimension_numbers = #tpu.dot_dimension_numbers<[1], [0], [0], [1], [0, 0, 1, 1], [], []>} : vector<8x286xf32>, vector<286x122xf32>, vector<8x122xf32> -> vector<8x122xf32>
    %c0_30 = arith.constant 0 : index
    %c0_31 = arith.constant 0 : index
    %c0_32 = arith.constant 0 : index
    %77 = vector.load %arg9[%c0_30, %c0_31, %c0_32] : memref<1x8x122xf32, #tpu.memory_space<vmem>>, vector<1x8x122xf32>
    %78 = vector.shape_cast %77 : vector<1x8x122xf32> to vector<8x122xf32>
    %79 = vector.shape_cast %76 : vector<8x122xf32> to vector<1x8x122xf32>
    tpu.vector_store %arg9[%c0_30, %c0_31, %c0_32], %79 {strides = array<i32>} : memref<1x8x122xf32, #tpu.memory_space<vmem>>, vector<1x8x122xf32>,
    return
  }
  func.func @transform_0(%arg0: i32) -> (i32, i32, i32) {
    %c0_i32 = arith.constant 0 : i32
    %c0_i32_0 = arith.constant 0 : i32
    %c0_i32_1 = arith.constant 0 : i32
    return %arg0, %c0_i32, %c0_i32_0 : i32, i32, i32
  }
  func.func @transform_1(%arg0: i32) -> (i32, i32) {
    %c0_i32 = arith.constant 0 : i32
    %c0_i32_0 = arith.constant 0 : i32
    %c0_i32_1 = arith.constant 0 : i32
    return %c0_i32, %c0_i32_0 : i32, i32
  }
  func.func @transform_2(%arg0: i32) -> (i32, i32) {
    %c0_i32 = arith.constant 0 : i32
    %c0_i32_0 = arith.constant 0 : i32
    %c0_i32_1 = arith.constant 0 : i32
    return %c0_i32, %c0_i32_0 : i32, i32
  }
  func.func @transform_3(%arg0: i32) -> (i32, i32) {
    %c0_i32 = arith.constant 0 : i32
    %c0_i32_0 = arith.constant 0 : i32
    %c0_i32_1 = arith.constant 0 : i32
    return %c0_i32, %c0_i32_0 : i32, i32
  }
  func.func @transform_4(%arg0: i32) -> (i32, i32) {
    %c0_i32 = arith.constant 0 : i32
    %c0_i32_0 = arith.constant 0 : i32
    %c0_i32_1 = arith.constant 0 : i32
    return %c0_i32, %c0_i32_0 : i32, i32
  }
  func.func @transform_5(%arg0: i32) -> (i32, i32) {
    %c0_i32 = arith.constant 0 : i32
    %c0_i32_0 = arith.constant 0 : i32
    %c0_i32_1 = arith.constant 0 : i32
    return %c0_i32, %c0_i32_0 : i32, i32
  }
  func.func @transform_6(%arg0: i32) -> (i32, i32) {
    %c0_i32 = arith.constant 0 : i32
    %c0_i32_0 = arith.constant 0 : i32
    %c0_i32_1 = arith.constant 0 : i32
    return %c0_i32, %c0_i32_0 : i32, i32
  }
  func.func @transform_7(%arg0: i32) -> (i32, i32, i32) {
    %c0_i32 = arith.constant 0 : i32
    %c0_i32_0 = arith.constant 0 : i32
    %c0_i32_1 = arith.constant 0 : i32
    return %arg0, %c0_i32, %c0_i32_0 : i32, i32, i32
  }
  func.func @transform_8(%arg0: i32) -> (i32, i32, i32) {
    %c0_i32 = arith.constant 0 : i32
    %c0_i32_0 = arith.constant 0 : i32
    %c0_i32_1 = arith.constant 0 : i32
    return %arg0, %c0_i32, %c0_i32_0 : i32, i32, i32
  }
}

module attributes {stable_mosaic.version = 11 : i64} {
  func.func @_convblock_pool_kernel(%arg0: i32, %arg1: memref<1x8x122xf32, #tpu.memory_space<vmem>>, %arg2: memref<16x72xbf16, #tpu.memory_space<vmem>>, %arg3: memref<16x144xbf16, #tpu.memory_space<vmem>>, %arg4: memref<1x100xf32, #tpu.memory_space<vmem>>, %arg5: memref<1x78xf32, #tpu.memory_space<vmem>>, %arg6: memref<78x64xf32, #tpu.memory_space<vmem>>, %arg7: memref<78x50xf32, #tpu.memory_space<vmem>>, %arg8: memref<1x16x64xf32, #tpu.memory_space<vmem>>, %arg9: memref<1x16x50xf32, #tpu.memory_space<vmem>>) attributes {dimension_semantics = [#tpu.dimension_semantics<parallel>], iteration_bounds = array<i64: 2>, scalar_prefetch = 0 : i64, scratch_operands = 0 : i64, tpu.core_type = #tpu.core_type<tc>, window_params = [{transform_indices = @transform_0, window_bounds = array<i64: 1, 8, 122>}, {pipeline_mode = #tpu.pipeline_mode<synchronous>, transform_indices = @transform_1, window_bounds = array<i64: 16, 72>}, {pipeline_mode = #tpu.pipeline_mode<synchronous>, transform_indices = @transform_2, window_bounds = array<i64: 16, 144>}, {pipeline_mode = #tpu.pipeline_mode<synchronous>, transform_indices = @transform_3, window_bounds = array<i64: 1, 100>}, {pipeline_mode = #tpu.pipeline_mode<synchronous>, transform_indices = @transform_4, window_bounds = array<i64: 1, 78>}, {pipeline_mode = #tpu.pipeline_mode<synchronous>, transform_indices = @transform_5, window_bounds = array<i64: 78, 64>}, {pipeline_mode = #tpu.pipeline_mode<synchronous>, transform_indices = @transform_6, window_bounds = array<i64: 78, 50>}, {transform_indices = @transform_7, window_bounds = array<i64: 1, 16, 64>}, {transform_indices = @transform_8, window_bounds = array<i64: 1, 16, 50>}]} {
    %c0 = arith.constant 0 : index
    %c0_0 = arith.constant 0 : index
    %0 = vector.load %arg4[%c0, %c0_0] : memref<1x100xf32, #tpu.memory_space<vmem>>, vector<1x100xf32>
    %c0_1 = arith.constant 0 : index
    %c0_2 = arith.constant 0 : index
    %1 = vector.load %arg5[%c0_1, %c0_2] : memref<1x78xf32, #tpu.memory_space<vmem>>, vector<1x78xf32>
    %c0_3 = arith.constant 0 : index
    %c0_4 = arith.constant 0 : index
    %c0_5 = arith.constant 0 : index
    %2 = vector.load %arg1[%c0_3, %c0_4, %c0_5] : memref<1x8x122xf32, #tpu.memory_space<vmem>>, vector<1x8x122xf32>
    %3 = vector.shape_cast %2 : vector<1x8x122xf32> to vector<8x122xf32>
    %c0_6 = arith.constant 0 : index
    %c0_7 = arith.constant 0 : index
    %4 = vector.load %arg2[%c0_6, %c0_7] : memref<16x72xbf16, #tpu.memory_space<vmem>>, vector<16x72xbf16>
    %5 = vector.extract_strided_slice %3 {offsets = [0, 0], sizes = [8, 100], strides = [1, 1]} : vector<8x122xf32> to vector<8x100xf32>
    %6 = vector.extract_strided_slice %3 {offsets = [0, 1], sizes = [8, 100], strides = [1, 1]} : vector<8x122xf32> to vector<8x100xf32>
    %7 = vector.extract_strided_slice %3 {offsets = [0, 2], sizes = [8, 100], strides = [1, 1]} : vector<8x122xf32> to vector<8x100xf32>
    %8 = vector.extract_strided_slice %3 {offsets = [0, 10], sizes = [8, 100], strides = [1, 1]} : vector<8x122xf32> to vector<8x100xf32>
    %9 = vector.extract_strided_slice %3 {offsets = [0, 11], sizes = [8, 100], strides = [1, 1]} : vector<8x122xf32> to vector<8x100xf32>
    %10 = vector.extract_strided_slice %3 {offsets = [0, 12], sizes = [8, 100], strides = [1, 1]} : vector<8x122xf32> to vector<8x100xf32>
    %11 = vector.extract_strided_slice %3 {offsets = [0, 20], sizes = [8, 100], strides = [1, 1]} : vector<8x122xf32> to vector<8x100xf32>
    %12 = vector.extract_strided_slice %3 {offsets = [0, 21], sizes = [8, 100], strides = [1, 1]} : vector<8x122xf32> to vector<8x100xf32>
    %13 = vector.extract_strided_slice %3 {offsets = [0, 22], sizes = [8, 100], strides = [1, 1]} : vector<8x122xf32> to vector<8x100xf32>
    %14 = tpu.concatenate %5, %6, %7, %8, %9, %10, %11, %12, %13 in 0 : vector<8x100xf32>, vector<8x100xf32>, vector<8x100xf32>, vector<8x100xf32>, vector<8x100xf32>, vector<8x100xf32>, vector<8x100xf32>, vector<8x100xf32>, vector<8x100xf32> -> vector<72x100xf32>
    %15 = arith.truncf %14 : vector<72x100xf32> to vector<72x100xbf16>
    %cst = arith.constant dense<0.000000e+00> : vector<16x100xf32>
    %16 = tpu.matmul %4, %15, %cst {dimension_numbers = #tpu.dot_dimension_numbers<[1], [0], [0], [1], [0, 0, 1, 1], [], []>} : vector<16x72xbf16>, vector<72x100xbf16>, vector<16x100xf32> -> vector<16x100xf32>
    %17 = vector.broadcast %0 : vector<1x100xf32> to vector<16x100xf32>
    %18 = arith.mulf %16, %17 : vector<16x100xf32>
    %cst_8 = arith.constant dense<0.000000e+00> : vector<16xf32>
    %19 = vector.multi_reduction <add>, %18, %cst_8 [1] : vector<16x100xf32> to vector<16xf32>
    %20 = vector.shape_cast %19 : vector<16xf32> to vector<16x1xf32>
    %cst_9 = arith.constant 1.562500e-02 : f32
    %21 = vector.broadcast %cst_9 : f32 to vector<16x1xf32>
    %22 = arith.mulf %20, %21 : vector<16x1xf32>
    %23 = vector.broadcast %22 : vector<16x1xf32> to vector<16x100xf32>
    %24 = arith.subf %16, %23 : vector<16x100xf32>
    %25 = vector.broadcast %0 : vector<1x100xf32> to vector<16x100xf32>
    %26 = arith.mulf %24, %25 : vector<16x100xf32>
    %27 = arith.mulf %26, %26 : vector<16x100xf32>
    %cst_10 = arith.constant dense<0.000000e+00> : vector<16xf32>
    %28 = vector.multi_reduction <add>, %27, %cst_10 [1] : vector<16x100xf32> to vector<16xf32>
    %29 = vector.shape_cast %28 : vector<16xf32> to vector<16x1xf32>
    %cst_11 = arith.constant 1.562500e-02 : f32
    %30 = vector.broadcast %cst_11 : f32 to vector<16x1xf32>
    %31 = arith.mulf %29, %30 : vector<16x1xf32>
    %cst_12 = arith.constant 9.99999974E-6 : f32
    %32 = vector.broadcast %cst_12 : f32 to vector<16x1xf32>
    %33 = arith.addf %31, %32 : vector<16x1xf32>
    %34 = math.rsqrt %33 : vector<16x1xf32>
    %35 = vector.broadcast %34 : vector<16x1xf32> to vector<16x100xf32>
    %36 = arith.mulf %26, %35 : vector<16x100xf32>
    %c0_13 = arith.constant 0 : index
    %c0_14 = arith.constant 0 : index
    %37 = vector.load %arg3[%c0_13, %c0_14] : memref<16x144xbf16, #tpu.memory_space<vmem>>, vector<16x144xbf16>
    %38 = vector.extract_strided_slice %36 {offsets = [0, 0], sizes = [16, 78], strides = [1, 1]} : vector<16x100xf32> to vector<16x78xf32>
    %39 = vector.extract_strided_slice %36 {offsets = [0, 1], sizes = [16, 78], strides = [1, 1]} : vector<16x100xf32> to vector<16x78xf32>
    %40 = vector.extract_strided_slice %36 {offsets = [0, 2], sizes = [16, 78], strides = [1, 1]} : vector<16x100xf32> to vector<16x78xf32>
    %41 = vector.extract_strided_slice %36 {offsets = [0, 10], sizes = [16, 78], strides = [1, 1]} : vector<16x100xf32> to vector<16x78xf32>
    %42 = vector.extract_strided_slice %36 {offsets = [0, 11], sizes = [16, 78], strides = [1, 1]} : vector<16x100xf32> to vector<16x78xf32>
    %43 = vector.extract_strided_slice %36 {offsets = [0, 12], sizes = [16, 78], strides = [1, 1]} : vector<16x100xf32> to vector<16x78xf32>
    %44 = vector.extract_strided_slice %36 {offsets = [0, 20], sizes = [16, 78], strides = [1, 1]} : vector<16x100xf32> to vector<16x78xf32>
    %45 = vector.extract_strided_slice %36 {offsets = [0, 21], sizes = [16, 78], strides = [1, 1]} : vector<16x100xf32> to vector<16x78xf32>
    %46 = vector.extract_strided_slice %36 {offsets = [0, 22], sizes = [16, 78], strides = [1, 1]} : vector<16x100xf32> to vector<16x78xf32>
    %47 = tpu.concatenate %38, %39, %40, %41, %42, %43, %44, %45, %46 in 0 : vector<16x78xf32>, vector<16x78xf32>, vector<16x78xf32>, vector<16x78xf32>, vector<16x78xf32>, vector<16x78xf32>, vector<16x78xf32>, vector<16x78xf32>, vector<16x78xf32> -> vector<144x78xf32>
    %48 = arith.truncf %47 : vector<144x78xf32> to vector<144x78xbf16>
    %cst_15 = arith.constant dense<0.000000e+00> : vector<16x78xf32>
    %49 = tpu.matmul %37, %48, %cst_15 {dimension_numbers = #tpu.dot_dimension_numbers<[1], [0], [0], [1], [0, 0, 1, 1], [], []>} : vector<16x144xbf16>, vector<144x78xbf16>, vector<16x78xf32> -> vector<16x78xf32>
    %50 = vector.broadcast %1 : vector<1x78xf32> to vector<16x78xf32>
    %51 = arith.mulf %49, %50 : vector<16x78xf32>
    %cst_16 = arith.constant dense<0.000000e+00> : vector<16xf32>
    %52 = vector.multi_reduction <add>, %51, %cst_16 [1] : vector<16x78xf32> to vector<16xf32>
    %53 = vector.shape_cast %52 : vector<16xf32> to vector<16x1xf32>
    %cst_17 = arith.constant 1.562500e-02 : f32
    %54 = vector.broadcast %cst_17 : f32 to vector<16x1xf32>
    %55 = arith.mulf %53, %54 : vector<16x1xf32>
    %56 = vector.broadcast %55 : vector<16x1xf32> to vector<16x78xf32>
    %57 = arith.subf %49, %56 : vector<16x78xf32>
    %58 = vector.broadcast %1 : vector<1x78xf32> to vector<16x78xf32>
    %59 = arith.mulf %57, %58 : vector<16x78xf32>
    %60 = arith.mulf %59, %59 : vector<16x78xf32>
    %cst_18 = arith.constant dense<0.000000e+00> : vector<16xf32>
    %61 = vector.multi_reduction <add>, %60, %cst_18 [1] : vector<16x78xf32> to vector<16xf32>
    %62 = vector.shape_cast %61 : vector<16xf32> to vector<16x1xf32>
    %cst_19 = arith.constant 1.562500e-02 : f32
    %63 = vector.broadcast %cst_19 : f32 to vector<16x1xf32>
    %64 = arith.mulf %62, %63 : vector<16x1xf32>
    %cst_20 = arith.constant 9.99999974E-6 : f32
    %65 = vector.broadcast %cst_20 : f32 to vector<16x1xf32>
    %66 = arith.addf %64, %65 : vector<16x1xf32>
    %67 = math.rsqrt %66 : vector<16x1xf32>
    %68 = vector.broadcast %67 : vector<16x1xf32> to vector<16x78xf32>
    %69 = arith.mulf %59, %68 : vector<16x78xf32>
    %c0_21 = arith.constant 0 : index
    %c0_22 = arith.constant 0 : index
    %70 = vector.load %arg6[%c0_21, %c0_22] : memref<78x64xf32, #tpu.memory_space<vmem>>, vector<78x64xf32>
    %cst_23 = arith.constant dense<0.000000e+00> : vector<16x64xf32>
    %71 = tpu.matmul %69, %70, %cst_23 {dimension_numbers = #tpu.dot_dimension_numbers<[1], [0], [0], [1], [0, 0, 1, 1], [], []>} : vector<16x78xf32>, vector<78x64xf32>, vector<16x64xf32> -> vector<16x64xf32>
    %c0_24 = arith.constant 0 : index
    %c0_25 = arith.constant 0 : index
    %c0_26 = arith.constant 0 : index
    %72 = vector.load %arg8[%c0_24, %c0_25, %c0_26] : memref<1x16x64xf32, #tpu.memory_space<vmem>>, vector<1x16x64xf32>
    %73 = vector.shape_cast %72 : vector<1x16x64xf32> to vector<16x64xf32>
    %74 = vector.shape_cast %71 : vector<16x64xf32> to vector<1x16x64xf32>
    tpu.vector_store %arg8[%c0_24, %c0_25, %c0_26], %74 {strides = array<i32>} : memref<1x16x64xf32, #tpu.memory_space<vmem>>, vector<1x16x64xf32>,
    %c0_27 = arith.constant 0 : index
    %c0_28 = arith.constant 0 : index
    %75 = vector.load %arg7[%c0_27, %c0_28] : memref<78x50xf32, #tpu.memory_space<vmem>>, vector<78x50xf32>
    %cst_29 = arith.constant dense<0.000000e+00> : vector<16x50xf32>
    %76 = tpu.matmul %69, %75, %cst_29 {dimension_numbers = #tpu.dot_dimension_numbers<[1], [0], [0], [1], [0, 0, 1, 1], [], []>} : vector<16x78xf32>, vector<78x50xf32>, vector<16x50xf32> -> vector<16x50xf32>
    %c0_30 = arith.constant 0 : index
    %c0_31 = arith.constant 0 : index
    %c0_32 = arith.constant 0 : index
    %77 = vector.load %arg9[%c0_30, %c0_31, %c0_32] : memref<1x16x50xf32, #tpu.memory_space<vmem>>, vector<1x16x50xf32>
    %78 = vector.shape_cast %77 : vector<1x16x50xf32> to vector<16x50xf32>
    %79 = vector.shape_cast %76 : vector<16x50xf32> to vector<1x16x50xf32>
    tpu.vector_store %arg9[%c0_30, %c0_31, %c0_32], %79 {strides = array<i32>} : memref<1x16x50xf32, #tpu.memory_space<vmem>>, vector<1x16x50xf32>,
    return
  }
  func.func @transform_0(%arg0: i32) -> (i32, i32, i32) {
    %c0_i32 = arith.constant 0 : i32
    %c0_i32_0 = arith.constant 0 : i32
    %c0_i32_1 = arith.constant 0 : i32
    return %arg0, %c0_i32, %c0_i32_0 : i32, i32, i32
  }
  func.func @transform_1(%arg0: i32) -> (i32, i32) {
    %c0_i32 = arith.constant 0 : i32
    %c0_i32_0 = arith.constant 0 : i32
    %c0_i32_1 = arith.constant 0 : i32
    return %c0_i32, %c0_i32_0 : i32, i32
  }
  func.func @transform_2(%arg0: i32) -> (i32, i32) {
    %c0_i32 = arith.constant 0 : i32
    %c0_i32_0 = arith.constant 0 : i32
    %c0_i32_1 = arith.constant 0 : i32
    return %c0_i32, %c0_i32_0 : i32, i32
  }
  func.func @transform_3(%arg0: i32) -> (i32, i32) {
    %c0_i32 = arith.constant 0 : i32
    %c0_i32_0 = arith.constant 0 : i32
    %c0_i32_1 = arith.constant 0 : i32
    return %c0_i32, %c0_i32_0 : i32, i32
  }
  func.func @transform_4(%arg0: i32) -> (i32, i32) {
    %c0_i32 = arith.constant 0 : i32
    %c0_i32_0 = arith.constant 0 : i32
    %c0_i32_1 = arith.constant 0 : i32
    return %c0_i32, %c0_i32_0 : i32, i32
  }
  func.func @transform_5(%arg0: i32) -> (i32, i32) {
    %c0_i32 = arith.constant 0 : i32
    %c0_i32_0 = arith.constant 0 : i32
    %c0_i32_1 = arith.constant 0 : i32
    return %c0_i32, %c0_i32_0 : i32, i32
  }
  func.func @transform_6(%arg0: i32) -> (i32, i32) {
    %c0_i32 = arith.constant 0 : i32
    %c0_i32_0 = arith.constant 0 : i32
    %c0_i32_1 = arith.constant 0 : i32
    return %c0_i32, %c0_i32_0 : i32, i32
  }
  func.func @transform_7(%arg0: i32) -> (i32, i32, i32) {
    %c0_i32 = arith.constant 0 : i32
    %c0_i32_0 = arith.constant 0 : i32
    %c0_i32_1 = arith.constant 0 : i32
    return %arg0, %c0_i32, %c0_i32_0 : i32, i32, i32
  }
  func.func @transform_8(%arg0: i32) -> (i32, i32, i32) {
    %c0_i32 = arith.constant 0 : i32
    %c0_i32_0 = arith.constant 0 : i32
    %c0_i32_1 = arith.constant 0 : i32
    return %arg0, %c0_i32, %c0_i32_0 : i32, i32, i32
  }
}

</mosaic_0001>

<llo_original>
// kernel: forward.3
$region0: #{forward.3}
  #allocation0 [shape = 'u32[]', space=smem, size = 0x4, offset = 0x4, fixed_abs, tag = 'smem constant byte address 0x4 - core index']
  #allocation1 [shape = 'u32[144,128]{1,0:T(1,128)}', space=vmem, size = 0x12000, scoped, tag = 'internal scratch']
  %s0 = inlined_call_operand.vmem [shape: f32[2,8,122], index: 0, kind: input, shape index: {}]
  %s1 = inlined_call_operand.vmem [shape: bf16[16,72], index: 1, kind: input, shape index: {}]
  %s2 = inlined_call_operand.vmem [shape: bf16[16,144], index: 2, kind: input, shape index: {}]
  %s3 = inlined_call_operand.vmem [shape: f32[1,100], index: 3, kind: input, shape index: {}]
  %s4 = inlined_call_operand.vmem [shape: f32[1,78], index: 4, kind: input, shape index: {}]
  %s5 = inlined_call_operand.vmem [shape: f32[78,64], index: 5, kind: input, shape index: {}]
  %s6 = inlined_call_operand.vmem [shape: f32[78,50], index: 6, kind: input, shape index: {}]
  %s7 = inlined_call_operand.vmem [shape: f32[2,16,64], index: 7, kind: output, shape index: {0}]
  %s8 = inlined_call_operand.vmem [shape: f32[2,16,50], index: 8, kind: output, shape index: {1}]
  %9 = xla_tuple %s7, %s8
  %s10 = sld [smem:[#allocation0]]
  $region69: #{forward.3} parent=0
    _
  %s12 = ssub.s32 1, %s10
  %s13 = scalar_select 0, %s12, %s10
  loop: start=0, step=1, limit=4
  $region2: #{forward.3} parent=0 // loop_pre_header
    _
  $region3: #{forward.3} parent=0 // loop_header
    %s15 = sphi 0, %s19
    %p16 = scmp.ge.s32.totalorder %s15, 4
    %s25 = sphi 0, %s27
    %s28 = sphi 0, %s25
    %s29 = sphi 0, %s28
    %s45 = sphi 0, %s29
    %s49 = sphi 0, %s49
    %s51 = sphi 0, %s49
    %s52 = sphi 0, %s51
    %s66 = sphi 0, %s52
    %s70 = sphi 0, %s70
    %s72 = sphi 0, %s70
    %s73 = sphi 0, %s72
    %s87 = sphi 0, %s73
    %s91 = sphi 0, %s91
    %s93 = sphi 0, %s91
    %s94 = sphi 0, %s93
    %s108 = sphi 0, %s94
    %s112 = sphi 0, %s112
    %s114 = sphi 0, %s112
    %s115 = sphi 0, %s114
    %s129 = sphi 0, %s115
    %s133 = sphi 0, %s133
    %s135 = sphi 0, %s133
    %s136 = sphi 0, %s135
    %s150 = sphi 0, %s136
    %s154 = sphi 0, %s154
    %s156 = sphi 0, %s154
    %s157 = sphi 0, %s156
    %s171 = sphi 0, %s157
    %s177 = sphi 0, %s179
    %s180 = sphi 0, %s177
    %s181 = sphi 0, %s180
    %s197 = sphi 0, %s181
    %s203 = sphi 0, %s205
    %s206 = sphi 0, %s203
    %s207 = sphi 0, %s206
    %s223 = sphi 0, %s207
  $region4: #{forward.3} parent=0 // loop_header_branch
    %18 = sbr.rel (%p16) target = $region8
  $region5: #{forward.3} parent=0 // loop_body
    %s20 = ssub.s32 %s15, 1
    %s21 = ssub.s32 %s15, 2
    %s22 = sadd.s32 %s15, 1
    %s23 = ssub.s32 %s15, %s22
    %p24 = scmp.eq.s32.totalorder %s23, 0
    %s26 = sadd.s32 %s25, 1
    %s27 = scalar_select %p24, %s25, %s26
    %p30 = pneg %p24
    %p31 = scmp.eq.s32.totalorder %s15, 1
    %p32 = por %p30, %p31
    %p33 = scmp.ne.s32.totalorder %s25, %s28
    %p34 = scmp.eq.s32.totalorder %s15, 0
    %p35 = por %p33, %p34
    %p36 = scmp.ne.s32.totalorder %s25, %s28
    %p37 = scmp.eq.s32.totalorder %s20, 1
    %p38 = por %p36, %p37
    %p39 = scmp.ne.s32.totalorder %s28, %s29
    %p40 = scmp.eq.s32.totalorder %s20, 0
    %p41 = por %p39, %p40
    %p42 = scmp.ne.s32.totalorder %s28, %s29
    %p43 = scmp.eq.s32.totalorder %s21, 1
    %p44 = por %p42, %p43
    %p46 = scmp.ne.s32.totalorder %s29, %s45
    %p47 = scmp.eq.s32.totalorder %s21, 0
    %p48 = por %p46, %p47
    %s50 = sadd.s32 %s49, 1
    %p53 = scmp.eq.s32.totalorder %s15, 1
    %p54 = scmp.ne.s32.totalorder %s49, %s51
    %p55 = scmp.eq.s32.totalorder %s15, 0
    %p56 = por %p54, %p55
    %p57 = scmp.ne.s32.totalorder %s49, %s51
    %p58 = scmp.eq.s32.totalorder %s20, 1
    %p59 = por %p57, %p58
    %p60 = scmp.ne.s32.totalorder %s51, %s52
    %p61 = scmp.eq.s32.totalorder %s20, 0
    %p62 = por %p60, %p61
    %p63 = scmp.ne.s32.totalorder %s51, %s52
    %p64 = scmp.eq.s32.totalorder %s21, 1
    %p65 = por %p63, %p64
    %p67 = scmp.ne.s32.totalorder %s52, %s66
    %p68 = scmp.eq.s32.totalorder %s21, 0
    %p69 = por %p67, %p68
    %s71 = sadd.s32 %s70, 1
    %p74 = scmp.eq.s32.totalorder %s15, 1
    %p75 = scmp.ne.s32.totalorder %s70, %s72
    %p76 = scmp.eq.s32.totalorder %s15, 0
    %p77 = por %p75, %p76
    %p78 = scmp.ne.s32.totalorder %s70, %s72
    %p79 = scmp.eq.s32.totalorder %s20, 1
    %p80 = por %p78, %p79
    %p81 = scmp.ne.s32.totalorder %s72, %s73
    %p82 = scmp.eq.s32.totalorder %s20, 0
    %p83 = por %p81, %p82
    %p84 = scmp.ne.s32.totalorder %s72, %s73
    %p85 = scmp.eq.s32.totalorder %s21, 1
    %p86 = por %p84, %p85
    %p88 = scmp.ne.s32.totalorder %s73, %s87
    %p89 = scmp.eq.s32.totalorder %s21, 0
    %p90 = por %p88, %p89
    %s92 = sadd.s32 %s91, 1
    %p95 = scmp.eq.s32.totalorder %s15, 1
    %p96 = scmp.ne.s32.totalorder %s91, %s93
    %p97 = scmp.eq.s32.totalorder %s15, 0
    %p98 = por %p96, %p97
    %p99 = scmp.ne.s32.totalorder %s91, %s93
    %p100 = scmp.eq.s32.totalorder %s20, 1
    %p101 = por %p99, %p100
    %p102 = scmp.ne.s32.totalorder %s93, %s94
    %p103 = scmp.eq.s32.totalorder %s20, 0
    %p104 = por %p102, %p103
    %p105 = scmp.ne.s32.totalorder %s93, %s94
    %p106 = scmp.eq.s32.totalorder %s21, 1
    %p107 = por %p105, %p106
    %p109 = scmp.ne.s32.totalorder %s94, %s108
    %p110 = scmp.eq.s32.totalorder %s21, 0
    %p111 = por %p109, %p110
    %s113 = sadd.s32 %s112, 1
    %p116 = scmp.eq.s32.totalorder %s15, 1
    %p117 = scmp.ne.s32.totalorder %s112, %s114
    %p118 = scmp.eq.s32.totalorder %s15, 0
    %p119 = por %p117, %p118
    %p120 = scmp.ne.s32.totalorder %s112, %s114
    %p121 = scmp.eq.s32.totalorder %s20, 1
    %p122 = por %p120, %p121
    %p123 = scmp.ne.s32.totalorder %s114, %s115
    %p124 = scmp.eq.s32.totalorder %s20, 0
    %p125 = por %p123, %p124
    %p126 = scmp.ne.s32.totalorder %s114, %s115
    %p127 = scmp.eq.s32.totalorder %s21, 1
    %p128 = por %p126, %p127
    %p130 = scmp.ne.s32.totalorder %s115, %s129
    %p131 = scmp.eq.s32.totalorder %s21, 0
    %p132 = por %p130, %p131
    %s134 = sadd.s32 %s133, 1
    %p137 = scmp.eq.s32.totalorder %s15, 1
    %p138 = scmp.ne.s32.totalorder %s133, %s135
    %p139 = scmp.eq.s32.totalorder %s15, 0
    %p140 = por %p138, %p139
    %p141 = scmp.ne.s32.totalorder %s133, %s135
    %p142 = scmp.eq.s32.totalorder %s20, 1
    %p143 = por %p141, %p142
    %p144 = scmp.ne.s32.totalorder %s135, %s136
    %p145 = scmp.eq.s32.totalorder %s20, 0
    %p146 = por %p144, %p145
    %p147 = scmp.ne.s32.totalorder %s135, %s136
    %p148 = scmp.eq.s32.totalorder %s21, 1
    %p149 = por %p147, %p148
    %p151 = scmp.ne.s32.totalorder %s136, %s150
    %p152 = scmp.eq.s32.totalorder %s21, 0
    %p153 = por %p151, %p152
    %s155 = sadd.s32 %s154, 1
    %p158 = scmp.eq.s32.totalorder %s15, 1
    %p159 = scmp.ne.s32.totalorder %s154, %s156
    %p160 = scmp.eq.s32.totalorder %s15, 0
    %p161 = por %p159, %p160
    %p162 = scmp.ne.s32.totalorder %s154, %s156
    %p163 = scmp.eq.s32.totalorder %s20, 1
    %p164 = por %p162, %p163
    %p165 = scmp.ne.s32.totalorder %s156, %s157
    %p166 = scmp.eq.s32.totalorder %s20, 0
    %p167 = por %p165, %p166
    %p168 = scmp.ne.s32.totalorder %s156, %s157
    %p169 = scmp.eq.s32.totalorder %s21, 1
    %p170 = por %p168, %p169
    %p172 = scmp.ne.s32.totalorder %s157, %s171
    %p173 = scmp.eq.s32.totalorder %s21, 0
    %p174 = por %p172, %p173
    %s175 = ssub.s32 %s15, %s22
    %p176 = scmp.eq.s32.totalorder %s175, 0
    %s178 = sadd.s32 %s177, 1
    %s179 = scalar_select %p176, %s177, %s178
    %p182 = pneg %p176
    %p183 = scmp.eq.s32.totalorder %s15, 1
    %p184 = por %p182, %p183
    %p185 = scmp.ne.s32.totalorder %s177, %s180
    %p186 = scmp.eq.s32.totalorder %s15, 0
    %p187 = por %p185, %p186
    %p188 = scmp.ne.s32.totalorder %s177, %s180
    %p189 = scmp.eq.s32.totalorder %s20, 1
    %p190 = por %p188, %p189
    %p191 = scmp.ne.s32.totalorder %s180, %s181
    %p192 = scmp.eq.s32.totalorder %s20, 0
    %p193 = por %p191, %p192
    %p194 = scmp.ne.s32.totalorder %s180, %s181
    %p195 = scmp.eq.s32.totalorder %s21, 1
    %p196 = por %p194, %p195
    %p198 = scmp.ne.s32.totalorder %s181, %s197
    %p199 = scmp.eq.s32.totalorder %s21, 0
    %p200 = por %p198, %p199
    %s201 = ssub.s32 %s15, %s22
    %p202 = scmp.eq.s32.totalorder %s201, 0
    %s204 = sadd.s32 %s203, 1
    %s205 = scalar_select %p202, %s203, %s204
    %p208 = pneg %p202
    %p209 = scmp.eq.s32.totalorder %s15, 1
    %p210 = por %p208, %p209
    %p211 = scmp.ne.s32.totalorder %s203, %s206
    %p212 = scmp.eq.s32.totalorder %s15, 0
    %p213 = por %p211, %p212
    %p214 = scmp.ne.s32.totalorder %s203, %s206
    %p215 = scmp.eq.s32.totalorder %s20, 1
    %p216 = por %p214, %p215
    %p217 = scmp.ne.s32.totalorder %s206, %s207
    %p218 = scmp.eq.s32.totalorder %s20, 0
    %p219 = por %p217, %p218
    %p220 = scmp.ne.s32.totalorder %s206, %s207
    %p221 = scmp.eq.s32.totalorder %s21, 1
    %p222 = por %p220, %p221
    %p224 = scmp.ne.s32.totalorder %s207, %s223
    %p225 = scmp.eq.s32.totalorder %s21, 0
    %p226 = por %p224, %p225
    %p227 = scmp.le.s32.totalorder 1, %s15
    %p228 = scmp.lt.s32.totalorder %s15, 3
    %p229 = pnand %p227, %p228
    %p230 = pneg %p229
    // Predicated region
    $region9: #{forward.3} parent=5 // pred_check
      _
    $region10: #{forward.3} parent=5 // pred_check_branch
      %232 = sbr.rel (%p229) target = $region12
    $region11: #{forward.3} parent=5 // pred_region
      %s233 = ssub.s32 %s15, 1
      // Predicated region
      $region13: #{forward.3} parent=11 // pred_check
        %p234 = pneg %p62
      $region14: #{forward.3} parent=11 // pred_check_branch
        %236 = sbr.rel (%p234) target = $region16
      $region15: #{forward.3} parent=11 // pred_region
        _
      $region16: #{forward.3} parent=11 // pred_fallthru
        _
      // Predicated region
      $region17: #{forward.3} parent=11 // pred_check
        %p237 = pneg %p83
      $region18: #{forward.3} parent=11 // pred_check_branch
        %239 = sbr.rel (%p237) target = $region20
      $region19: #{forward.3} parent=11 // pred_region
        _
      $region20: #{forward.3} parent=11 // pred_fallthru
        _
      // Predicated region
      $region21: #{forward.3} parent=11 // pred_check
        %p240 = pneg %p104
      $region22: #{forward.3} parent=11 // pred_check_branch
        %242 = sbr.rel (%p240) target = $region24
      $region23: #{forward.3} parent=11 // pred_region
        _
      $region24: #{forward.3} parent=11 // pred_fallthru
        _
      // Predicated region
      $region25: #{forward.3} parent=11 // pred_check
        %p243 = pneg %p125
      $region26: #{forward.3} parent=11 // pred_check_branch
        %245 = sbr.rel (%p243) target = $region28
      $region27: #{forward.3} parent=11 // pred_region
        _
      $region28: #{forward.3} parent=11 // pred_fallthru
        _
      // Predicated region
      $region29: #{forward.3} parent=11 // pred_check
        %p246 = pneg %p146
      $region30: #{forward.3} parent=11 // pred_check_branch
        %248 = sbr.rel (%p246) target = $region32
      $region31: #{forward.3} parent=11 // pred_region
        _
      $region32: #{forward.3} parent=11 // pred_fallthru
        _
      // Predicated region
      $region33: #{forward.3} parent=11 // pred_check
        %p249 = pneg %p167
      $region34: #{forward.3} parent=11 // pred_check_branch
        %251 = sbr.rel (%p249) target = $region36
      $region35: #{forward.3} parent=11 // pred_region
        _
      $region36: #{forward.3} parent=11 // pred_fallthru
        _
    $region12: #{forward.3} parent=5 // pred_fallthru
      _
    %p252 = scmp.lt.s32.totalorder %s15, 2
    // Predicated region
    $region37: #{forward.3} parent=5 // pred_check
      %p253 = pneg %p252
    $region38: #{forward.3} parent=5 // pred_check_branch
      %255 = sbr.rel (%p253) target = $region40
    $region39: #{forward.3} parent=5 // pred_region
      // Predicated region
      $region41: #{forward.3} parent=39 // pred_check
        %p256 = pneg %p35
      $region42: #{forward.3} parent=39 // pred_check_branch
        %258 = sbr.rel (%p256) target = $region44
      $region43: #{forward.3} parent=39 // pred_region
        %p259 = scmp.lt.s32.totalorder %s15, 1
        %s260 = scalar_select %p259, %s15, 1
        %s261 = smul.addr %s260, 8
        %s262 = scalar_lea.vmem %s0, %s261
      $region44: #{forward.3} parent=39 // pred_fallthru
        _
    $region40: #{forward.3} parent=5 // pred_fallthru
      _
    %p263 = scmp.le.s32.totalorder 1, %s15
    %p264 = scmp.lt.s32.totalorder %s15, 3
    %p265 = pnand %p263, %p264
    %p266 = pneg %p265
    // Predicated region
    $region45: #{forward.3} parent=5 // pred_check
      _
    $region46: #{forward.3} parent=5 // pred_check_branch
      %268 = sbr.rel (%p265) target = $region48
    $region47: #{forward.3} parent=5 // pred_region
      %s269 = ssub.s32 %s15, 1
      %p270 = scmp.lt.s32.totalorder %s20, 1
      %s271 = scalar_select %p270, %s20, 1
      %s272 = smul.addr %s271, 8
      %s273 = scalar_lea.vmem %s0, %s272
      %p274 = pneg %p41
      %p275 = pneg %p38
      %p276 = pneg %p62
      %p277 = pneg %p59
      %p278 = pneg %p83
      %p279 = pneg %p80
      %p280 = pneg %p104
      %p281 = pneg %p101
      %p282 = pneg %p125
      %p283 = pneg %p122
      %p284 = pneg %p146
      %p285 = pneg %p143
      %p286 = pneg %p167
      %p287 = pneg %p164
      %p288 = pneg %p193
      %p289 = pneg %p190
      %p290 = scmp.lt.s32.totalorder %s20, 1
      %s291 = scalar_select %p290, %s20, 1
      %s292 = smul.addr %s291, 2
      %s293 = smul.addr %s292, 8
      %s294 = scalar_lea.vmem %s7, %s293
      %p295 = pneg %p219
      %p296 = pneg %p216
      %p297 = scmp.lt.s32.totalorder %s20, 1
      %s298 = scalar_select %p297, %s20, 1
      %s299 = smul.addr %s298, 2
      %s300 = smul.addr %s299, 8
      %s301 = scalar_lea.vmem %s8, %s300
      %p302 = scmp.lt.s32.totalorder %s20, 1
      %s303 = scalar_select %p302, %s20, 1
      %s304 = smul.addr %s303, 8
      %s305 = scalar_lea.vmem %s0, %s304
      %p306 = scmp.lt.s32.totalorder %s20, 1
      %s307 = scalar_select %p306, %s20, 1
      %s308 = smul.addr %s307, 2
      %s309 = smul.addr %s308, 8
      %s310 = scalar_lea.vmem %s7, %s309
      %p311 = scmp.lt.s32.totalorder %s20, 1
      %s312 = scalar_select %p311, %s20, 1
      %s313 = smul.addr %s312, 2
      %s314 = smul.addr %s313, 8
      %s315 = scalar_lea.vmem %s8, %s314
      %v317 = vld [vmem:[%s3] sm:$0x1]
      %v318 = vld [vmem:[%s4] sm:$0x1]
      %v319 = vld [vmem:[%s305] sm:$0xff]
      %v320 = vld [vmem:[%s1] sm:$0xf]
      %v321 = vld [vmem:[%s1 + $0x4] sm:$0xf]
      %323 = vrot.lane.b32.xlu0 %v319, 127
      %v324 = vpop.permute.xlu0 %323
      %326 = vrot.lane.b32.xlu0 %v319, 126
      %v327 = vpop.permute.xlu0 %326
      %329 = vrot.lane.b32.xlu0 %v319, 118
      %v330 = vpop.permute.xlu0 %329
      %332 = vrot.lane.b32.xlu0 %v319, 117
      %v333 = vpop.permute.xlu0 %332
      %335 = vrot.lane.b32.xlu0 %v319, 116
      %v336 = vpop.permute.xlu0 %335
      %338 = vrot.lane.b32.xlu0 %v319, 108
      %v339 = vpop.permute.xlu0 %338
      %341 = vrot.lane.b32.xlu0 %v319, 107
      %v342 = vpop.permute.xlu0 %341
      %344 = vrot.lane.b32.xlu0 %v319, 106
      %v345 = vpop.permute.xlu0 %344
      %v347 = vpack.c.bf16 %v324, %v319
      %v348 = vpack.c.bf16 %v330, %v327
      %v349 = vpack.c.bf16 %v336, %v333
      %v350 = vpack.c.bf16 %v342, %v339
      %v351 = vpack.c.bf16 %v345, %v345
      %v354 = vunpack.c.l.b16 %v320
      %v355 = vunpack.c.l.b16 %v321
      %v356 = vpack.c.b16 %v355, %v354
      %vm357 = vcmask 588800
      %v359 = vsel %vm357, %v356, 0
      %vm361 = vcmask 1043456
      %v363 = vsel %vm361, %v351, 0
      %365 = vmatprep.subr.bf16.mxu0 0
      %366 = vmatpush1.bf16.msra.mxu0 0
      %367 = vmatprep.subr.bf16.mxu0 0
      %368 = vmatpush1.bf16.msra.mxu0 0
      %369 = vmatprep.subr.bf16.mxu0 0
      %370 = vmatpush1.bf16.msra.mxu0 0
      %371 = vmatprep.subr.bf16.mxu0 0
      %372 = vmatpush1.bf16.msra.mxu0 %v363
      %373 = vmatprep.subr.bf16.mxu0 0
      %374 = vmatpush1.bf16.msra.mxu0 %v350
      %375 = vmatprep.subr.bf16.mxu0 0
      %376 = vmatpush1.bf16.msra.mxu0 %v349
      %377 = vmatprep.subr.bf16.mxu0 0
      %378 = vmatpush1.bf16.msra.mxu0 %v348
      %379 = vmatprep.subr.bf16.mxu0 0
      %380 = vmatpush1.bf16.msra.mxu0 %v347
      %381 = vmatprep.subr.bf16.mxu0 0
      %382 = vmatpush2.bf16.msra.mxu0 0
      %383 = vmatprep.subr.bf16.mxu0 0
      %384 = vmatpush2.bf16.msra.mxu0 0
      %385 = vmatprep.subr.bf16.mxu0 0
      %386 = vmatpush2.bf16.msra.mxu0 0
      %387 = vmatprep.subr.bf16.mxu0 0
      %388 = vmatpush2.bf16.msra.mxu0 0
      %389 = vmatprep.subr.bf16.mxu0 0
      %390 = vmatpush2.bf16.msra.mxu0 0
      %391 = vmatprep.subr.bf16.mxu0 0
      %392 = vmatpush2.bf16.msra.mxu0 0
      %393 = vmatprep.subr.bf16.mxu0 0
      %394 = vmatpush2.bf16.msra.mxu0 0
      %395 = vmatprep.subr.bf16.mxu0 0
      %396 = vmatpush2.bf16.msra.mxu0 0
      %397 = vmatprep.mubr.bf16.mxu0 0
      %398 = vmatmul.mubr.bf16.gmra.mxu0 %v359
      %v399 = vpop.f32.mrf.mxu0
      %v400 = vadd.f32 0.0, %v399
      %v401 = vpop.f32.mrf.mxu0
      %v402 = vpop.f32.mrf.mxu0
      %v403 = vadd.f32 0.0, %v402
      %v404 = vpop.f32.mrf.mxu0
      %405 = vdwg.mxu0
      %v407 = vlaneseq
      %v408 = vshrl.u32 %v407, 7
      %v409 = vsub.s32 0, %v408
      %v410 = vrot.slane %v317, %v409
      %v412 = vmul.f32 %v400, %v410
      %v413 = vmul.f32 %v403, %v410
      %vm414 = vcmask 818176
      %v415 = vsel %vm414, %v412, 0.0
      %416 = vadd.xlane.f32.xlu0 %v415
      %v417 = vpop.xlane.xlu0 %416
      %v418 = vsel %vm414, %v413, 0.0
      %419 = vadd.xlane.f32.xlu0 %v418
      %v420 = vpop.xlane.xlu0 %419
      %v421 = vmul.f32 %v417, 0.015625
      %v422 = vmul.f32 %v420, 0.015625
      %v423 = vsub.f32 %v400, %v421
      %v424 = vsub.f32 %v403, %v422
      %v425 = vmul.f32 %v423, %v410
      %v426 = vmul.f32 %v424, %v410
      %v427 = vmul.f32 %v425, %v425
      %v428 = vmul.f32 %v426, %v426
      %v429 = vsel %vm414, %v427, 0.0
      %430 = vadd.xlane.f32.xlu0 %v429
      %v431 = vpop.xlane.xlu0 %430
      %v432 = vsel %vm414, %v428, 0.0
      %433 = vadd.xlane.f32.xlu0 %v432
      %v434 = vpop.xlane.xlu0 %433
      %v435 = vmul.f32 %v431, 0.015625
      %v436 = vmul.f32 %v434, 0.015625
      %v437 = vadd.f32 %v435, 1e-05
      %v438 = vadd.f32 %v436, 1e-05
      %v439 = vrsqrt.pop %v437
      %v440 = vrsqrt.pop %v438
      %v441 = vmul.f32 %v425, %v439
      %v442 = vmul.f32 %v426, %v440
      %v443 = vld [vmem:[%s2] sm:$0xff]
      %v444 = vld [vmem:[%s2 + $0x8] sm:$0xff]
      %447 = vrot.lane.b32.xlu0 %v441, 127
      %v448 = vpop.permute.xlu0 %447
      %449 = vrot.lane.b32.xlu0 %v442, 127
      %v450 = vpop.permute.xlu0 %449
      %453 = vrot.lane.b32.xlu0 %v441, 126
      %v454 = vpop.permute.xlu0 %453
      %455 = vrot.lane.b32.xlu0 %v442, 126
      %v456 = vpop.permute.xlu0 %455
      %459 = vrot.lane.b32.xlu0 %v441, 118
      %v460 = vpop.permute.xlu0 %459
      %461 = vrot.lane.b32.xlu0 %v442, 118
      %v462 = vpop.permute.xlu0 %461
      %465 = vrot.lane.b32.xlu0 %v441, 117
      %v466 = vpop.permute.xlu0 %465
      %467 = vrot.lane.b32.xlu0 %v442, 117
      %v468 = vpop.permute.xlu0 %467
      %471 = vrot.lane.b32.xlu0 %v441, 116
      %v472 = vpop.permute.xlu0 %471
      %473 = vrot.lane.b32.xlu0 %v442, 116
      %v474 = vpop.permute.xlu0 %473
      %477 = vrot.lane.b32.xlu0 %v441, 108
      %v478 = vpop.permute.xlu0 %477
      %479 = vrot.lane.b32.xlu0 %v442, 108
      %v480 = vpop.permute.xlu0 %479
      %483 = vrot.lane.b32.xlu0 %v441, 107
      %v484 = vpop.permute.xlu0 %483
      %485 = vrot.lane.b32.xlu0 %v442, 107
      %v486 = vpop.permute.xlu0 %485
      %489 = vrot.lane.b32.xlu0 %v441, 106
      %v490 = vpop.permute.xlu0 %489
      %491 = vrot.lane.b32.xlu0 %v442, 106
      %v492 = vpop.permute.xlu0 %491
      %v495 = vpack.c.bf16 %v442, %v441
      %v496 = vpack.c.bf16 %v450, %v448
      %v497 = vpack.c.bf16 %v456, %v454
      %v498 = vpack.c.bf16 %v462, %v460
      %v499 = vpack.c.bf16 %v468, %v466
      %v500 = vpack.c.bf16 %v474, %v472
      %v501 = vpack.c.bf16 %v480, %v478
      %v502 = vpack.c.bf16 %v486, %v484
      %v503 = vpack.c.bf16 %v492, %v490
      %v506 = vunpack.c.l.b16 %v443
      %v507 = vunpack.c.h.b16 %v443
      %v508 = vunpack.c.l.b16 %v444
      %v509 = vunpack.c.h.b16 %v444
      %v510 = vpack.c.b16 %v508, %v506
      %v511 = vpack.c.b16 %v509, %v507
      %vm513 = vcmask 130048
      %v515 = vsel %vm513, %v511, 0
      %517 = vmatprep.subr.bf16.mxu0 0
      %518 = vmatpush1.bf16.msra.mxu0 %v502
      %519 = vmatprep.subr.bf16.mxu0 0
      %520 = vmatpush1.bf16.msra.mxu0 %v501
      %521 = vmatprep.subr.bf16.mxu0 0
      %522 = vmatpush1.bf16.msra.mxu0 %v500
      %523 = vmatprep.subr.bf16.mxu0 0
      %524 = vmatpush1.bf16.msra.mxu0 %v499
      %525 = vmatprep.subr.bf16.mxu0 0
      %526 = vmatpush1.bf16.msra.mxu0 %v498
      %527 = vmatprep.subr.bf16.mxu0 0
      %528 = vmatpush1.bf16.msra.mxu0 %v497
      %529 = vmatprep.subr.bf16.mxu0 0
      %530 = vmatpush1.bf16.msra.mxu0 %v496
      %531 = vmatprep.subr.bf16.mxu0 0
      %532 = vmatpush1.bf16.msra.mxu0 %v495
      %533 = vmatprep.subr.bf16.mxu0 0
      %534 = vmatpush2.bf16.msra.mxu0 0
      %535 = vmatprep.subr.bf16.mxu0 0
      %536 = vmatpush2.bf16.msra.mxu0 0
      %537 = vmatprep.subr.bf16.mxu0 0
      %538 = vmatpush2.bf16.msra.mxu0 0
      %539 = vmatprep.subr.bf16.mxu0 0
      %540 = vmatpush2.bf16.msra.mxu0 0
      %541 = vmatprep.subr.bf16.mxu0 0
      %542 = vmatpush2.bf16.msra.mxu0 0
      %543 = vmatprep.subr.bf16.mxu0 0
      %544 = vmatpush2.bf16.msra.mxu0 0
      %545 = vmatprep.subr.bf16.mxu0 0
      %546 = vmatpush2.bf16.msra.mxu0 0
      %547 = vmatprep.subr.bf16.mxu0 0
      %548 = vmatpush2.bf16.msra.mxu0 %v503
      %549 = vmatprep.mubr.bf16.mxu0 %v515
      %550 = vmatmul.mubr.bf16.gmra.mxu0 %v510
      %v551 = vpop.f32.mrf.mxu0
      %v552 = vadd.f32 0.0, %v551
      %v553 = vpop.f32.mrf.mxu0
      %v554 = vpop.f32.mrf.mxu0
      %v555 = vadd.f32 0.0, %v554
      %v556 = vpop.f32.mrf.mxu0
      %557 = vdwg.mxu0
      %v559 = vlaneseq
      %v560 = vshrl.u32 %v559, 7
      %v561 = vsub.s32 0, %v560
      %v562 = vrot.slane %v318, %v561
      %v564 = vmul.f32 %v552, %v562
      %v565 = vmul.f32 %v555, %v562
      %vm566 = vcmask 637952
      %v567 = vsel %vm566, %v564, 0.0
      %568 = vadd.xlane.f32.xlu0 %v567
      %v569 = vpop.xlane.xlu0 %568
      %v570 = vsel %vm566, %v565, 0.0
      %571 = vadd.xlane.f32.xlu0 %v570
      %v572 = vpop.xlane.xlu0 %571
      %v573 = vmul.f32 %v569, 0.015625
      %v574 = vmul.f32 %v572, 0.015625
      %v575 = vsub.f32 %v552, %v573
      %v576 = vsub.f32 %v555, %v574
      %v577 = vmul.f32 %v575, %v562
      %v578 = vmul.f32 %v576, %v562
      %v579 = vmul.f32 %v577, %v577
      %v580 = vmul.f32 %v578, %v578
      %v581 = vsel %vm566, %v579, 0.0
      %582 = vadd.xlane.f32.xlu0 %v581
      %v583 = vpop.xlane.xlu0 %582
      %v584 = vsel %vm566, %v580, 0.0
      %585 = vadd.xlane.f32.xlu0 %v584
      %v586 = vpop.xlane.xlu0 %585
      %v587 = vmul.f32 %v583, 0.015625
      %v588 = vmul.f32 %v586, 0.015625
      %v589 = vadd.f32 %v587, 1e-05
      %v590 = vadd.f32 %v588, 1e-05
      %v591 = vrsqrt.pop %v589
      %v592 = vrsqrt.pop %v590
      %v593 = vmul.f32 %v577, %v591
      %v594 = vmul.f32 %v578, %v592
      %v595 = vld [vmem:[%s5] sm:$0xff]
      %v596 = vld [vmem:[%s5 + $0x8] sm:$0xff]
      %v597 = vld [vmem:[%s5 + $0x10] sm:$0xff]
      %v598 = vld [vmem:[%s5 + $0x18] sm:$0xff]
      %v599 = vld [vmem:[%s5 + $0x20] sm:$0xff]
      %v600 = vld [vmem:[%s5 + $0x28] sm:$0xff]
      %v601 = vld [vmem:[%s5 + $0x30] sm:$0xff]
      %v602 = vld [vmem:[%s5 + $0x38] sm:$0xff]
      %v603 = vld [vmem:[%s5 + $0x40] sm:$0xff]
      %v604 = vld [vmem:[%s5 + $0x48] sm:$0x3f]
      %v606 = vsel %vm566, %v593, 0
      %v609 = vsel %vm566, %v594, 0
      %vm611 = vcmask 1045504
      %v613 = vsel %vm611, %v604, 0
      %615 = vmatprep.subr.mxu0 0.0
      %616 = vmatpush1.msra.mxu0 0.0
      %617 = vmatprep.subr.mxu0 0.0
      %618 = vmatpush1.msra.mxu0 0.0
      %619 = vmatprep.subr.mxu0 0.0
      %620 = vmatpush1.msra.mxu0 0.0
      %621 = vmatprep.subr.mxu0 0.0
      %622 = vmatpush1.msra.mxu0 0.0
      %623 = vmatprep.subr.mxu0 0.0
      %624 = vmatpush1.msra.mxu0 0.0
      %625 = vmatprep.subr.mxu0 0.0
      %626 = vmatpush1.msra.mxu0 0.0
      %627 = vmatprep.subr.mxu0 0.0
      %628 = vmatpush1.msra.mxu0 %v613
      %629 = vmatprep.subr.mxu0 0.0
      %630 = vmatpush1.msra.mxu0 %v603
      %631 = vmatprep.subr.mxu0 0.0
      %632 = vmatpush1.msra.mxu0 %v602
      %633 = vmatprep.subr.mxu0 0.0
      %634 = vmatpush1.msra.mxu0 %v601
      %635 = vmatprep.subr.mxu0 0.0
      %636 = vmatpush1.msra.mxu0 %v600
      %637 = vmatprep.subr.mxu0 0.0
      %638 = vmatpush1.msra.mxu0 %v599
      %639 = vmatprep.subr.mxu0 0.0
      %640 = vmatpush1.msra.mxu0 %v598
      %641 = vmatprep.subr.mxu0 0.0
      %642 = vmatpush1.msra.mxu0 %v597
      %643 = vmatprep.subr.mxu0 0.0
      %644 = vmatpush1.msra.mxu0 %v596
      %645 = vmatprep.subr.mxu0 0.0
      %646 = vmatpush1.msra.mxu0 %v595
      %647 = vmatprep.subr.mxu0 0.0
      %648 = vmatpush2.msra.mxu0 0.0
      %649 = vmatprep.subr.mxu0 0.0
      %650 = vmatpush2.msra.mxu0 0.0
      %651 = vmatprep.subr.mxu0 0.0
      %652 = vmatpush2.msra.mxu0 0.0
      %653 = vmatprep.subr.mxu0 0.0
      %654 = vmatpush2.msra.mxu0 0.0
      %655 = vmatprep.subr.mxu0 0.0
      %656 = vmatpush2.msra.mxu0 0.0
      %657 = vmatprep.subr.mxu0 0.0
      %658 = vmatpush2.msra.mxu0 0.0
      %659 = vmatprep.subr.mxu0 0.0
      %660 = vmatpush2.msra.mxu0 0.0
      %661 = vmatprep.subr.mxu0 0.0
      %662 = vmatpush2.msra.mxu0 0.0
      %663 = vmatprep.subr.mxu0 0.0
      %664 = vmatpush2.msra.mxu0 0.0
      %665 = vmatprep.subr.mxu0 0.0
      %666 = vmatpush2.msra.mxu0 0.0
      %667 = vmatprep.subr.mxu0 0.0
      %668 = vmatpush2.msra.mxu0 0.0
      %669 = vmatprep.subr.mxu0 0.0
      %670 = vmatpush2.msra.mxu0 0.0
      %671 = vmatprep.subr.mxu0 0.0
      %672 = vmatpush2.msra.mxu0 0.0
      %673 = vmatprep.subr.mxu0 0.0
      %674 = vmatpush2.msra.mxu0 0.0
      %675 = vmatprep.subr.mxu0 0.0
      %676 = vmatpush2.msra.mxu0 0.0
      %677 = vmatprep.subr.mxu0 0.0
      %678 = vmatpush2.msra.mxu0 0.0
      %679 = vmatprep.mubr.f32.mxu0 0.0
      %680 = vmatmul.mubr.f32.gmra.mxu0 %v606
      %v681 = vpop.f32.mrf.mxu0
      %v682 = vadd.f32 0.0, %v681
      %v683 = vpop.f32.mrf.mxu0
      %684 = vmatprep.mubr.f32.mxu0 0.0
      %685 = vmatmul.mubr.f32.gmra.mxu0 %v609
      %v686 = vpop.f32.mrf.mxu0
      %v687 = vadd.f32 0.0, %v686
      %v688 = vpop.f32.mrf.mxu0
      %689 = vdwg.mxu0
      %vm690 = vcmask 523264
      %691 = vst.msk [vmem:[%s310] sm:$0xff] %vm690, %v682
      %692 = vst.msk [vmem:[%s310 + $0x8] sm:$0xff] %vm690, %v687
      %v693 = vld [vmem:[%s6] sm:$0xff]
      %v694 = vld [vmem:[%s6 + $0x8] sm:$0xff]
      %v695 = vld [vmem:[%s6 + $0x10] sm:$0xff]
      %v696 = vld [vmem:[%s6 + $0x18] sm:$0xff]
      %v697 = vld [vmem:[%s6 + $0x20] sm:$0xff]
      %v698 = vld [vmem:[%s6 + $0x28] sm:$0xff]
      %v699 = vld [vmem:[%s6 + $0x30] sm:$0xff]
      %v700 = vld [vmem:[%s6 + $0x38] sm:$0xff]
      %v701 = vld [vmem:[%s6 + $0x40] sm:$0xff]
      %v702 = vld [vmem:[%s6 + $0x48] sm:$0x3f]
      %v704 = vsel %vm611, %v702, 0
      %706 = vmatprep.subr.mxu0 0.0
      %707 = vmatpush1.msra.mxu0 0.0
      %708 = vmatprep.subr.mxu0 0.0
      %709 = vmatpush1.msra.mxu0 0.0
      %710 = vmatprep.subr.mxu0 0.0
      %711 = vmatpush1.msra.mxu0 0.0
      %712 = vmatprep.subr.mxu0 0.0
      %713 = vmatpush1.msra.mxu0 0.0
      %714 = vmatprep.subr.mxu0 0.0
      %715 = vmatpush1.msra.mxu0 0.0
      %716 = vmatprep.subr.mxu0 0.0
      %717 = vmatpush1.msra.mxu0 0.0
      %718 = vmatprep.subr.mxu0 0.0
      %719 = vmatpush1.msra.mxu0 %v704
      %720 = vmatprep.subr.mxu0 0.0
      %721 = vmatpush1.msra.mxu0 %v701
      %722 = vmatprep.subr.mxu0 0.0
      %723 = vmatpush1.msra.mxu0 %v700
      %724 = vmatprep.subr.mxu0 0.0
      %725 = vmatpush1.msra.mxu0 %v699
      %726 = vmatprep.subr.mxu0 0.0
      %727 = vmatpush1.msra.mxu0 %v698
      %728 = vmatprep.subr.mxu0 0.0
      %729 = vmatpush1.msra.mxu0 %v697
      %730 = vmatprep.subr.mxu0 0.0
      %731 = vmatpush1.msra.mxu0 %v696
      %732 = vmatprep.subr.mxu0 0.0
      %733 = vmatpush1.msra.mxu0 %v695
      %734 = vmatprep.subr.mxu0 0.0
      %735 = vmatpush1.msra.mxu0 %v694
      %736 = vmatprep.subr.mxu0 0.0
      %737 = vmatpush1.msra.mxu0 %v693
      %738 = vmatprep.subr.mxu0 0.0
      %739 = vmatpush2.msra.mxu0 0.0
      %740 = vmatprep.subr.mxu0 0.0
      %741 = vmatpush2.msra.mxu0 0.0
      %742 = vmatprep.subr.mxu0 0.0
      %743 = vmatpush2.msra.mxu0 0.0
      %744 = vmatprep.subr.mxu0 0.0
      %745 = vmatpush2.msra.mxu0 0.0
      %746 = vmatprep.subr.mxu0 0.0
      %747 = vmatpush2.msra.mxu0 0.0
      %748 = vmatprep.subr.mxu0 0.0
      %749 = vmatpush2.msra.mxu0 0.0
      %750 = vmatprep.subr.mxu0 0.0
      %751 = vmatpush2.msra.mxu0 0.0
      %752 = vmatprep.subr.mxu0 0.0
      %753 = vmatpush2.msra.mxu0 0.0
      %754 = vmatprep.subr.mxu0 0.0
      %755 = vmatpush2.msra.mxu0 0.0
      %756 = vmatprep.subr.mxu0 0.0
      %757 = vmatpush2.msra.mxu0 0.0
      %758 = vmatprep.subr.mxu0 0.0
      %759 = vmatpush2.msra.mxu0 0.0
      %760 = vmatprep.subr.mxu0 0.0
      %761 = vmatpush2.msra.mxu0 0.0
      %762 = vmatprep.subr.mxu0 0.0
      %763 = vmatpush2.msra.mxu0 0.0
      %764 = vmatprep.subr.mxu0 0.0
      %765 = vmatpush2.msra.mxu0 0.0
      %766 = vmatprep.subr.mxu0 0.0
      %767 = vmatpush2.msra.mxu0 0.0
      %768 = vmatprep.subr.mxu0 0.0
      %769 = vmatpush2.msra.mxu0 0.0
      %770 = vmatprep.mubr.f32.mxu0 0.0
      %771 = vmatmul.mubr.f32.gmra.mxu0 %v606
      %v772 = vpop.f32.mrf.mxu0
      %v773 = vadd.f32 0.0, %v772
      %v774 = vpop.f32.mrf.mxu0
      %775 = vmatprep.mubr.f32.mxu0 0.0
      %776 = vmatmul.mubr.f32.gmra.mxu0 %v609
      %v777 = vpop.f32.mrf.mxu0
      %v778 = vadd.f32 0.0, %v777
      %v779 = vpop.f32.mrf.mxu0
      %780 = vdwg.mxu0
      %vm781 = vcmask 408576
      %782 = vst.msk [vmem:[%s315] sm:$0xff] %vm781, %v773
      %783 = vst.msk [vmem:[%s315 + $0x8] sm:$0xff] %vm781, %v778
      %p784 = scmp.lt.s32.totalorder %s20, 1
      %s785 = scalar_select %p784, %s20, 1
      %s786 = smul.addr %s785, 2
      %s787 = smul.addr %s786, 8
      %s788 = scalar_lea.vmem %s7, %s787
      %p789 = scmp.lt.s32.totalorder %s20, 1
      %s790 = scalar_select %p789, %s20, 1
      %s791 = smul.addr %s790, 2
      %s792 = smul.addr %s791, 8
      %s793 = scalar_lea.vmem %s8, %s792
      // Predicated region
      $region49: #{forward.3} parent=47 // pred_check
        %p794 = pneg %p190
      $region50: #{forward.3} parent=47 // pred_check_branch
        %796 = sbr.rel (%p794) target = $region52
      $region51: #{forward.3} parent=47 // pred_region
        _
      $region52: #{forward.3} parent=47 // pred_fallthru
        _
      // Predicated region
      $region53: #{forward.3} parent=47 // pred_check
        %p797 = pneg %p216
      $region54: #{forward.3} parent=47 // pred_check_branch
        %799 = sbr.rel (%p797) target = $region56
      $region55: #{forward.3} parent=47 // pred_region
        _
      $region56: #{forward.3} parent=47 // pred_fallthru
        _
    $region48: #{forward.3} parent=5 // pred_fallthru
      _
    %p800 = scmp.le.s32.totalorder 2, %s15
    // Predicated region
    $region57: #{forward.3} parent=5 // pred_check
      %p801 = pneg %p800
    $region58: #{forward.3} parent=5 // pred_check_branch
      %803 = sbr.rel (%p801) target = $region60
    $region59: #{forward.3} parent=5 // pred_region
      %s804 = ssub.s32 %s15, 2
      // Predicated region
      $region61: #{forward.3} parent=59 // pred_check
        %p805 = pneg %p196
      $region62: #{forward.3} parent=59 // pred_check_branch
        %807 = sbr.rel (%p805) target = $region64
      $region63: #{forward.3} parent=59 // pred_region
        %p808 = scmp.lt.s32.totalorder %s21, 1
        %s809 = scalar_select %p808, %s21, 1
        %s810 = smul.addr %s809, 2
        %s811 = smul.addr %s810, 8
        %s812 = scalar_lea.vmem %s7, %s811
      $region64: #{forward.3} parent=59 // pred_fallthru
        _
      // Predicated region
      $region65: #{forward.3} parent=59 // pred_check
        %p813 = pneg %p222
      $region66: #{forward.3} parent=59 // pred_check_branch
        %815 = sbr.rel (%p813) target = $region68
      $region67: #{forward.3} parent=59 // pred_region
        %p816 = scmp.lt.s32.totalorder %s21, 1
        %s817 = scalar_select %p816, %s21, 1
        %s818 = smul.addr %s817, 2
        %s819 = smul.addr %s818, 8
        %s820 = scalar_lea.vmem %s8, %s819
      $region68: #{forward.3} parent=59 // pred_fallthru
        _
    $region60: #{forward.3} parent=5 // pred_fallthru
      _
  $region6: #{forward.3} parent=0 // loop_footer
    %s19 = sadd.s32 1, %s15
  $region7: #{forward.3} parent=0 // loop_footer_branch
    %14 = sbr.rel target = $region3
  $region8: #{forward.3} parent=0 // loop_exit
    _

// kernel: forward.2
$region0: #{forward.2}
  #allocation0 [shape = 'u32[]', space=smem, size = 0x4, offset = 0x4, fixed_abs, tag = 'smem constant byte address 0x4 - core index']
  #allocation1 [shape = 'u32[144,128]{1,0:T(1,128)}', space=vmem, size = 0x12000, scoped, tag = 'internal scratch']
  %s0 = inlined_call_operand.vmem [shape: f32[2,8,362], index: 0, kind: input, shape index: {}]
  %s1 = inlined_call_operand.vmem [shape: bf16[8,72], index: 1, kind: input, shape index: {}]
  %s2 = inlined_call_operand.vmem [shape: bf16[8,72], index: 2, kind: input, shape index: {}]
  %s3 = inlined_call_operand.vmem [shape: f32[1,324], index: 3, kind: input, shape index: {}]
  %s4 = inlined_call_operand.vmem [shape: f32[1,286], index: 4, kind: input, shape index: {}]
  %s5 = inlined_call_operand.vmem [shape: f32[286,256], index: 5, kind: input, shape index: {}]
  %s6 = inlined_call_operand.vmem [shape: f32[286,122], index: 6, kind: input, shape index: {}]
  %s7 = inlined_call_operand.vmem [shape: f32[2,8,256], index: 7, kind: output, shape index: {0}]
  %s8 = inlined_call_operand.vmem [shape: f32[2,8,122], index: 8, kind: output, shape index: {1}]
  %9 = xla_tuple %s7, %s8
  %s10 = sld [smem:[#allocation0]]
  $region69: #{forward.2} parent=0
    _
  %s12 = ssub.s32 1, %s10
  %s13 = scalar_select 0, %s12, %s10
  loop: start=0, step=1, limit=4
  $region2: #{forward.2} parent=0 // loop_pre_header
    _
  $region3: #{forward.2} parent=0 // loop_header
    %s15 = sphi 0, %s19
    %p16 = scmp.ge.s32.totalorder %s15, 4
    %s25 = sphi 0, %s27
    %s28 = sphi 0, %s25
    %s29 = sphi 0, %s28
    %s45 = sphi 0, %s29
    %s49 = sphi 0, %s49
    %s51 = sphi 0, %s49
    %s52 = sphi 0, %s51
    %s66 = sphi 0, %s52
    %s70 = sphi 0, %s70
    %s72 = sphi 0, %s70
    %s73 = sphi 0, %s72
    %s87 = sphi 0, %s73
    %s91 = sphi 0, %s91
    %s93 = sphi 0, %s91
    %s94 = sphi 0, %s93
    %s108 = sphi 0, %s94
    %s112 = sphi 0, %s112
    %s114 = sphi 0, %s112
    %s115 = sphi 0, %s114
    %s129 = sphi 0, %s115
    %s133 = sphi 0, %s133
    %s135 = sphi 0, %s133
    %s136 = sphi 0, %s135
    %s150 = sphi 0, %s136
    %s154 = sphi 0, %s154
    %s156 = sphi 0, %s154
    %s157 = sphi 0, %s156
    %s171 = sphi 0, %s157
    %s177 = sphi 0, %s179
    %s180 = sphi 0, %s177
    %s181 = sphi 0, %s180
    %s197 = sphi 0, %s181
    %s203 = sphi 0, %s205
    %s206 = sphi 0, %s203
    %s207 = sphi 0, %s206
    %s223 = sphi 0, %s207
  $region4: #{forward.2} parent=0 // loop_header_branch
    %18 = sbr.rel (%p16) target = $region8
  $region5: #{forward.2} parent=0 // loop_body
    %s20 = ssub.s32 %s15, 1
    %s21 = ssub.s32 %s15, 2
    %s22 = sadd.s32 %s15, 1
    %s23 = ssub.s32 %s15, %s22
    %p24 = scmp.eq.s32.totalorder %s23, 0
    %s26 = sadd.s32 %s25, 1
    %s27 = scalar_select %p24, %s25, %s26
    %p30 = pneg %p24
    %p31 = scmp.eq.s32.totalorder %s15, 1
    %p32 = por %p30, %p31
    %p33 = scmp.ne.s32.totalorder %s25, %s28
    %p34 = scmp.eq.s32.totalorder %s15, 0
    %p35 = por %p33, %p34
    %p36 = scmp.ne.s32.totalorder %s25, %s28
    %p37 = scmp.eq.s32.totalorder %s20, 1
    %p38 = por %p36, %p37
    %p39 = scmp.ne.s32.totalorder %s28, %s29
    %p40 = scmp.eq.s32.totalorder %s20, 0
    %p41 = por %p39, %p40
    %p42 = scmp.ne.s32.totalorder %s28, %s29
    %p43 = scmp.eq.s32.totalorder %s21, 1
    %p44 = por %p42, %p43
    %p46 = scmp.ne.s32.totalorder %s29, %s45
    %p47 = scmp.eq.s32.totalorder %s21, 0
    %p48 = por %p46, %p47
    %s50 = sadd.s32 %s49, 1
    %p53 = scmp.eq.s32.totalorder %s15, 1
    %p54 = scmp.ne.s32.totalorder %s49, %s51
    %p55 = scmp.eq.s32.totalorder %s15, 0
    %p56 = por %p54, %p55
    %p57 = scmp.ne.s32.totalorder %s49, %s51
    %p58 = scmp.eq.s32.totalorder %s20, 1
    %p59 = por %p57, %p58
    %p60 = scmp.ne.s32.totalorder %s51, %s52
    %p61 = scmp.eq.s32.totalorder %s20, 0
    %p62 = por %p60, %p61
    %p63 = scmp.ne.s32.totalorder %s51, %s52
    %p64 = scmp.eq.s32.totalorder %s21, 1
    %p65 = por %p63, %p64
    %p67 = scmp.ne.s32.totalorder %s52, %s66
    %p68 = scmp.eq.s32.totalorder %s21, 0
    %p69 = por %p67, %p68
    %s71 = sadd.s32 %s70, 1
    %p74 = scmp.eq.s32.totalorder %s15, 1
    %p75 = scmp.ne.s32.totalorder %s70, %s72
    %p76 = scmp.eq.s32.totalorder %s15, 0
    %p77 = por %p75, %p76
    %p78 = scmp.ne.s32.totalorder %s70, %s72
    %p79 = scmp.eq.s32.totalorder %s20, 1
    %p80 = por %p78, %p79
    %p81 = scmp.ne.s32.totalorder %s72, %s73
    %p82 = scmp.eq.s32.totalorder %s20, 0
    %p83 = por %p81, %p82
    %p84 = scmp.ne.s32.totalorder %s72, %s73
    %p85 = scmp.eq.s32.totalorder %s21, 1
    %p86 = por %p84, %p85
    %p88 = scmp.ne.s32.totalorder %s73, %s87
    %p89 = scmp.eq.s32.totalorder %s21, 0
    %p90 = por %p88, %p89
    %s92 = sadd.s32 %s91, 1
    %p95 = scmp.eq.s32.totalorder %s15, 1
    %p96 = scmp.ne.s32.totalorder %s91, %s93
    %p97 = scmp.eq.s32.totalorder %s15, 0
    %p98 = por %p96, %p97
    %p99 = scmp.ne.s32.totalorder %s91, %s93
    %p100 = scmp.eq.s32.totalorder %s20, 1
    %p101 = por %p99, %p100
    %p102 = scmp.ne.s32.totalorder %s93, %s94
    %p103 = scmp.eq.s32.totalorder %s20, 0
    %p104 = por %p102, %p103
    %p105 = scmp.ne.s32.totalorder %s93, %s94
    %p106 = scmp.eq.s32.totalorder %s21, 1
    %p107 = por %p105, %p106
    %p109 = scmp.ne.s32.totalorder %s94, %s108
    %p110 = scmp.eq.s32.totalorder %s21, 0
    %p111 = por %p109, %p110
    %s113 = sadd.s32 %s112, 1
    %p116 = scmp.eq.s32.totalorder %s15, 1
    %p117 = scmp.ne.s32.totalorder %s112, %s114
    %p118 = scmp.eq.s32.totalorder %s15, 0
    %p119 = por %p117, %p118
    %p120 = scmp.ne.s32.totalorder %s112, %s114
    %p121 = scmp.eq.s32.totalorder %s20, 1
    %p122 = por %p120, %p121
    %p123 = scmp.ne.s32.totalorder %s114, %s115
    %p124 = scmp.eq.s32.totalorder %s20, 0
    %p125 = por %p123, %p124
    %p126 = scmp.ne.s32.totalorder %s114, %s115
    %p127 = scmp.eq.s32.totalorder %s21, 1
    %p128 = por %p126, %p127
    %p130 = scmp.ne.s32.totalorder %s115, %s129
    %p131 = scmp.eq.s32.totalorder %s21, 0
    %p132 = por %p130, %p131
    %s134 = sadd.s32 %s133, 1
    %p137 = scmp.eq.s32.totalorder %s15, 1
    %p138 = scmp.ne.s32.totalorder %s133, %s135
    %p139 = scmp.eq.s32.totalorder %s15, 0
    %p140 = por %p138, %p139
    %p141 = scmp.ne.s32.totalorder %s133, %s135
    %p142 = scmp.eq.s32.totalorder %s20, 1
    %p143 = por %p141, %p142
    %p144 = scmp.ne.s32.totalorder %s135, %s136
    %p145 = scmp.eq.s32.totalorder %s20, 0
    %p146 = por %p144, %p145
    %p147 = scmp.ne.s32.totalorder %s135, %s136
    %p148 = scmp.eq.s32.totalorder %s21, 1
    %p149 = por %p147, %p148
    %p151 = scmp.ne.s32.totalorder %s136, %s150
    %p152 = scmp.eq.s32.totalorder %s21, 0
    %p153 = por %p151, %p152
    %s155 = sadd.s32 %s154, 1
    %p158 = scmp.eq.s32.totalorder %s15, 1
    %p159 = scmp.ne.s32.totalorder %s154, %s156
    %p160 = scmp.eq.s32.totalorder %s15, 0
    %p161 = por %p159, %p160
    %p162 = scmp.ne.s32.totalorder %s154, %s156
    %p163 = scmp.eq.s32.totalorder %s20, 1
    %p164 = por %p162, %p163
    %p165 = scmp.ne.s32.totalorder %s156, %s157
    %p166 = scmp.eq.s32.totalorder %s20, 0
    %p167 = por %p165, %p166
    %p168 = scmp.ne.s32.totalorder %s156, %s157
    %p169 = scmp.eq.s32.totalorder %s21, 1
    %p170 = por %p168, %p169
    %p172 = scmp.ne.s32.totalorder %s157, %s171
    %p173 = scmp.eq.s32.totalorder %s21, 0
    %p174 = por %p172, %p173
    %s175 = ssub.s32 %s15, %s22
    %p176 = scmp.eq.s32.totalorder %s175, 0
    %s178 = sadd.s32 %s177, 1
    %s179 = scalar_select %p176, %s177, %s178
    %p182 = pneg %p176
    %p183 = scmp.eq.s32.totalorder %s15, 1
    %p184 = por %p182, %p183
    %p185 = scmp.ne.s32.totalorder %s177, %s180
    %p186 = scmp.eq.s32.totalorder %s15, 0
    %p187 = por %p185, %p186
    %p188 = scmp.ne.s32.totalorder %s177, %s180
    %p189 = scmp.eq.s32.totalorder %s20, 1
    %p190 = por %p188, %p189
    %p191 = scmp.ne.s32.totalorder %s180, %s181
    %p192 = scmp.eq.s32.totalorder %s20, 0
    %p193 = por %p191, %p192
    %p194 = scmp.ne.s32.totalorder %s180, %s181
    %p195 = scmp.eq.s32.totalorder %s21, 1
    %p196 = por %p194, %p195
    %p198 = scmp.ne.s32.totalorder %s181, %s197
    %p199 = scmp.eq.s32.totalorder %s21, 0
    %p200 = por %p198, %p199
    %s201 = ssub.s32 %s15, %s22
    %p202 = scmp.eq.s32.totalorder %s201, 0
    %s204 = sadd.s32 %s203, 1
    %s205 = scalar_select %p202, %s203, %s204
    %p208 = pneg %p202
    %p209 = scmp.eq.s32.totalorder %s15, 1
    %p210 = por %p208, %p209
    %p211 = scmp.ne.s32.totalorder %s203, %s206
    %p212 = scmp.eq.s32.totalorder %s15, 0
    %p213 = por %p211, %p212
    %p214 = scmp.ne.s32.totalorder %s203, %s206
    %p215 = scmp.eq.s32.totalorder %s20, 1
    %p216 = por %p214, %p215
    %p217 = scmp.ne.s32.totalorder %s206, %s207
    %p218 = scmp.eq.s32.totalorder %s20, 0
    %p219 = por %p217, %p218
    %p220 = scmp.ne.s32.totalorder %s206, %s207
    %p221 = scmp.eq.s32.totalorder %s21, 1
    %p222 = por %p220, %p221
    %p224 = scmp.ne.s32.totalorder %s207, %s223
    %p225 = scmp.eq.s32.totalorder %s21, 0
    %p226 = por %p224, %p225
    %p227 = scmp.le.s32.totalorder 1, %s15
    %p228 = scmp.lt.s32.totalorder %s15, 3
    %p229 = pnand %p227, %p228
    %p230 = pneg %p229
    // Predicated region
    $region9: #{forward.2} parent=5 // pred_check
      _
    $region10: #{forward.2} parent=5 // pred_check_branch
      %232 = sbr.rel (%p229) target = $region12
    $region11: #{forward.2} parent=5 // pred_region
      %s233 = ssub.s32 %s15, 1
      // Predicated region
      $region13: #{forward.2} parent=11 // pred_check
        %p234 = pneg %p62
      $region14: #{forward.2} parent=11 // pred_check_branch
        %236 = sbr.rel (%p234) target = $region16
      $region15: #{forward.2} parent=11 // pred_region
        _
      $region16: #{forward.2} parent=11 // pred_fallthru
        _
      // Predicated region
      $region17: #{forward.2} parent=11 // pred_check
        %p237 = pneg %p83
      $region18: #{forward.2} parent=11 // pred_check_branch
        %239 = sbr.rel (%p237) target = $region20
      $region19: #{forward.2} parent=11 // pred_region
        _
      $region20: #{forward.2} parent=11 // pred_fallthru
        _
      // Predicated region
      $region21: #{forward.2} parent=11 // pred_check
        %p240 = pneg %p104
      $region22: #{forward.2} parent=11 // pred_check_branch
        %242 = sbr.rel (%p240) target = $region24
      $region23: #{forward.2} parent=11 // pred_region
        _
      $region24: #{forward.2} parent=11 // pred_fallthru
        _
      // Predicated region
      $region25: #{forward.2} parent=11 // pred_check
        %p243 = pneg %p125
      $region26: #{forward.2} parent=11 // pred_check_branch
        %245 = sbr.rel (%p243) target = $region28
      $region27: #{forward.2} parent=11 // pred_region
        _
      $region28: #{forward.2} parent=11 // pred_fallthru
        _
      // Predicated region
      $region29: #{forward.2} parent=11 // pred_check
        %p246 = pneg %p146
      $region30: #{forward.2} parent=11 // pred_check_branch
        %248 = sbr.rel (%p246) target = $region32
      $region31: #{forward.2} parent=11 // pred_region
        _
      $region32: #{forward.2} parent=11 // pred_fallthru
        _
      // Predicated region
      $region33: #{forward.2} parent=11 // pred_check
        %p249 = pneg %p167
      $region34: #{forward.2} parent=11 // pred_check_branch
        %251 = sbr.rel (%p249) target = $region36
      $region35: #{forward.2} parent=11 // pred_region
        _
      $region36: #{forward.2} parent=11 // pred_fallthru
        _
    $region12: #{forward.2} parent=5 // pred_fallthru
      _
    %p252 = scmp.lt.s32.totalorder %s15, 2
    // Predicated region
    $region37: #{forward.2} parent=5 // pred_check
      %p253 = pneg %p252
    $region38: #{forward.2} parent=5 // pred_check_branch
      %255 = sbr.rel (%p253) target = $region40
    $region39: #{forward.2} parent=5 // pred_region
      // Predicated region
      $region41: #{forward.2} parent=39 // pred_check
        %p256 = pneg %p35
      $region42: #{forward.2} parent=39 // pred_check_branch
        %258 = sbr.rel (%p256) target = $region44
      $region43: #{forward.2} parent=39 // pred_region
        %p259 = scmp.lt.s32.totalorder %s15, 1
        %s260 = scalar_select %p259, %s15, 1
        %s261 = smul.addr %s260, 3
        %s262 = smul.addr %s261, 8
        %s263 = scalar_lea.vmem %s0, %s262
      $region44: #{forward.2} parent=39 // pred_fallthru
        _
    $region40: #{forward.2} parent=5 // pred_fallthru
      _
    %p264 = scmp.le.s32.totalorder 1, %s15
    %p265 = scmp.lt.s32.totalorder %s15, 3
    %p266 = pnand %p264, %p265
    %p267 = pneg %p266
    // Predicated region
    $region45: #{forward.2} parent=5 // pred_check
      _
    $region46: #{forward.2} parent=5 // pred_check_branch
      %269 = sbr.rel (%p266) target = $region48
    $region47: #{forward.2} parent=5 // pred_region
      %s270 = ssub.s32 %s15, 1
      %p271 = scmp.lt.s32.totalorder %s20, 1
      %s272 = scalar_select %p271, %s20, 1
      %s273 = smul.addr %s272, 3
      %s274 = smul.addr %s273, 8
      %s275 = scalar_lea.vmem %s0, %s274
      %p276 = pneg %p41
      %p277 = pneg %p38
      %p278 = pneg %p62
      %p279 = pneg %p59
      %p280 = pneg %p83
      %p281 = pneg %p80
      %p282 = pneg %p104
      %p283 = pneg %p101
      %p284 = pneg %p125
      %p285 = pneg %p122
      %p286 = pneg %p146
      %p287 = pneg %p143
      %p288 = pneg %p167
      %p289 = pneg %p164
      %p290 = pneg %p193
      %p291 = pneg %p190
      %p292 = scmp.lt.s32.totalorder %s20, 1
      %s293 = scalar_select %p292, %s20, 1
      %s294 = smul.addr %s293, 2
      %s295 = smul.addr %s294, 8
      %s296 = scalar_lea.vmem %s7, %s295
      %p297 = pneg %p219
      %p298 = pneg %p216
      %p299 = scmp.lt.s32.totalorder %s20, 1
      %s300 = scalar_select %p299, %s20, 1
      %s301 = smul.addr %s300, 8
      %s302 = scalar_lea.vmem %s8, %s301
      %p303 = scmp.lt.s32.totalorder %s20, 1
      %s304 = scalar_select %p303, %s20, 1
      %s305 = smul.addr %s304, 3
      %s306 = smul.addr %s305, 8
      %s307 = scalar_lea.vmem %s0, %s306
      %p308 = scmp.lt.s32.totalorder %s20, 1
      %s309 = scalar_select %p308, %s20, 1
      %s310 = smul.addr %s309, 2
      %s311 = smul.addr %s310, 8
      %s312 = scalar_lea.vmem %s7, %s311
      %p313 = scmp.lt.s32.totalorder %s20, 1
      %s314 = scalar_select %p313, %s20, 1
      %s315 = smul.addr %s314, 8
      %s316 = scalar_lea.vmem %s8, %s315
      %v318 = vld [vmem:[%s3] sm:$0x7]
      %v319 = vld [vmem:[%s4] sm:$0x7]
      %v320 = vld [vmem:[%s307] sm:$0xff]
      %v321 = vld [vmem:[%s307 + $0x8] sm:$0xff]
      %v322 = vld [vmem:[%s307 + $0x10] sm:$0xff]
      %v323 = vld [vmem:[%s1] sm:$0xf]
      %327 = vrot.lane.b32.xlu0 %v320, 127
      %v328 = vpop.permute.xlu0 %327
      %329 = vrot.lane.b32.xlu0 %v321, 127
      %v330 = vpop.permute.xlu0 %329
      %331 = vrot.lane.b32.xlu0 %v322, 127
      %v332 = vpop.permute.xlu0 %331
      %vm333 = vcmask 1039360
      %v334 = vsel %vm333, %v328, %v330
      %v335 = vsel %vm333, %v330, %v332
      %339 = vrot.lane.b32.xlu0 %v320, 126
      %v340 = vpop.permute.xlu0 %339
      %341 = vrot.lane.b32.xlu0 %v321, 126
      %v342 = vpop.permute.xlu0 %341
      %343 = vrot.lane.b32.xlu0 %v322, 126
      %v344 = vpop.permute.xlu0 %343
      %vm345 = vcmask 1031168
      %v346 = vsel %vm345, %v340, %v342
      %v347 = vsel %vm345, %v342, %v344
      %351 = vrot.lane.b32.xlu0 %v320, 110
      %v352 = vpop.permute.xlu0 %351
      %353 = vrot.lane.b32.xlu0 %v321, 110
      %v354 = vpop.permute.xlu0 %353
      %355 = vrot.lane.b32.xlu0 %v322, 110
      %v356 = vpop.permute.xlu0 %355
      %vm357 = vcmask 900096
      %v358 = vsel %vm357, %v352, %v354
      %v359 = vsel %vm357, %v354, %v356
      %363 = vrot.lane.b32.xlu0 %v320, 109
      %v364 = vpop.permute.xlu0 %363
      %365 = vrot.lane.b32.xlu0 %v321, 109
      %v366 = vpop.permute.xlu0 %365
      %367 = vrot.lane.b32.xlu0 %v322, 109
      %v368 = vpop.permute.xlu0 %367
      %vm369 = vcmask 891904
      %v370 = vsel %vm369, %v364, %v366
      %v371 = vsel %vm369, %v366, %v368
      %375 = vrot.lane.b32.xlu0 %v320, 108
      %v376 = vpop.permute.xlu0 %375
      %377 = vrot.lane.b32.xlu0 %v321, 108
      %v378 = vpop.permute.xlu0 %377
      %379 = vrot.lane.b32.xlu0 %v322, 108
      %v380 = vpop.permute.xlu0 %379
      %vm381 = vcmask 883712
      %v382 = vsel %vm381, %v376, %v378
      %v383 = vsel %vm381, %v378, %v380
      %387 = vrot.lane.b32.xlu0 %v320, 92
      %v388 = vpop.permute.xlu0 %387
      %389 = vrot.lane.b32.xlu0 %v321, 92
      %v390 = vpop.permute.xlu0 %389
      %391 = vrot.lane.b32.xlu0 %v322, 92
      %v392 = vpop.permute.xlu0 %391
      %vm393 = vcmask 752640
      %v394 = vsel %vm393, %v388, %v390
      %v395 = vsel %vm393, %v390, %v392
      %399 = vrot.lane.b32.xlu0 %v320, 91
      %v400 = vpop.permute.xlu0 %399
      %401 = vrot.lane.b32.xlu0 %v321, 91
      %v402 = vpop.permute.xlu0 %401
      %403 = vrot.lane.b32.xlu0 %v322, 91
      %v404 = vpop.permute.xlu0 %403
      %vm405 = vcmask 744448
      %v406 = vsel %vm405, %v400, %v402
      %v407 = vsel %vm405, %v402, %v404
      %411 = vrot.lane.b32.xlu0 %v320, 90
      %v412 = vpop.permute.xlu0 %411
      %413 = vrot.lane.b32.xlu0 %v321, 90
      %v414 = vpop.permute.xlu0 %413
      %415 = vrot.lane.b32.xlu0 %v322, 90
      %v416 = vpop.permute.xlu0 %415
      %vm417 = vcmask 736256
      %v418 = vsel %vm417, %v412, %v414
      %v419 = vsel %vm417, %v414, %v416
      %v423 = vpack.c.bf16 %v334, %v320
      %v424 = vpack.c.bf16 %v335, %v321
      %v425 = vpack.c.bf16 %v332, %v322
      %v426 = vpack.c.bf16 %v358, %v346
      %v427 = vpack.c.bf16 %v359, %v347
      %v428 = vpack.c.bf16 %v356, %v344
      %v429 = vpack.c.bf16 %v382, %v370
      %v430 = vpack.c.bf16 %v383, %v371
      %v431 = vpack.c.bf16 %v380, %v368
      %v432 = vpack.c.bf16 %v406, %v394
      %v433 = vpack.c.bf16 %v407, %v395
      %v434 = vpack.c.bf16 %v404, %v392
      %v435 = vpack.c.bf16 %v418, %v418
      %v436 = vpack.c.bf16 %v419, %v419
      %v437 = vpack.c.bf16 %v416, %v416
      %vm438 = vcmask 588800
      %v440 = vsel %vm438, %v323, 0
      %vm442 = vcmask 1043456
      %v444 = vsel %vm442, %v435, 0
      %v447 = vsel %vm442, %v436, 0
      %v450 = vsel %vm442, %v437, 0
      %452 = vmatprep.subr.bf16.mxu0 0
      %453 = vmatpush1.bf16.msra.mxu0 0
      %454 = vmatprep.subr.bf16.mxu0 0
      %455 = vmatpush1.bf16.msra.mxu0 0
      %456 = vmatprep.subr.bf16.mxu0 0
      %457 = vmatpush1.bf16.msra.mxu0 0
      %458 = vmatprep.subr.bf16.mxu0 %v447
      %459 = vmatpush1.bf16.msra.mxu0 %v444
      %460 = vmatprep.subr.bf16.mxu0 %v433
      %461 = vmatpush1.bf16.msra.mxu0 %v432
      %462 = vmatprep.subr.bf16.mxu0 %v430
      %463 = vmatpush1.bf16.msra.mxu0 %v429
      %464 = vmatprep.subr.bf16.mxu0 %v427
      %465 = vmatpush1.bf16.msra.mxu0 %v426
      %466 = vmatprep.subr.bf16.mxu0 %v424
      %467 = vmatpush1.bf16.msra.mxu0 %v423
      %468 = vmatprep.subr.bf16.mxu0 0
      %469 = vmatpush2.bf16.msra.mxu0 0
      %470 = vmatprep.subr.bf16.mxu0 0
      %471 = vmatpush2.bf16.msra.mxu0 0
      %472 = vmatprep.subr.bf16.mxu0 0
      %473 = vmatpush2.bf16.msra.mxu0 0
      %474 = vmatprep.subr.bf16.mxu0 0
      %475 = vmatpush2.bf16.msra.mxu0 0
      %476 = vmatprep.subr.bf16.mxu0 0
      %477 = vmatpush2.bf16.msra.mxu0 0
      %478 = vmatprep.subr.bf16.mxu0 0
      %479 = vmatpush2.bf16.msra.mxu0 0
      %480 = vmatprep.subr.bf16.mxu0 0
      %481 = vmatpush2.bf16.msra.mxu0 0
      %482 = vmatprep.subr.bf16.mxu0 0
      %483 = vmatpush2.bf16.msra.mxu0 0
      %484 = vmatprep.mubr.bf16.mxu0 0
      %485 = vmatmul.mubr.bf16.gmra.mxu0 %v440
      %v486 = vpop.f32.mrf.mxu0
      %v487 = vadd.f32 0.0, %v486
      %v488 = vpop.f32.mrf.mxu0
      %v489 = vadd.f32 0.0, %v488
      %v490 = vpop.f32.mrf.mxu0
      %v491 = vpop.f32.mrf.mxu0
      %492 = vdwg.mxu0
      %493 = vmatprep.subr.bf16.mxu0 0
      %494 = vmatpush1.bf16.msra.mxu0 0
      %495 = vmatprep.subr.bf16.mxu0 0
      %496 = vmatpush1.bf16.msra.mxu0 0
      %497 = vmatprep.subr.bf16.mxu0 0
      %498 = vmatpush1.bf16.msra.mxu0 0
      %499 = vmatprep.subr.bf16.mxu0 0
      %500 = vmatpush1.bf16.msra.mxu0 %v450
      %501 = vmatprep.subr.bf16.mxu0 0
      %502 = vmatpush1.bf16.msra.mxu0 %v434
      %503 = vmatprep.subr.bf16.mxu0 0
      %504 = vmatpush1.bf16.msra.mxu0 %v431
      %505 = vmatprep.subr.bf16.mxu0 0
      %506 = vmatpush1.bf16.msra.mxu0 %v428
      %507 = vmatprep.subr.bf16.mxu0 0
      %508 = vmatpush1.bf16.msra.mxu0 %v425
      %509 = vmatprep.subr.bf16.mxu0 0
      %510 = vmatpush2.bf16.msra.mxu0 0
      %511 = vmatprep.subr.bf16.mxu0 0
      %512 = vmatpush2.bf16.msra.mxu0 0
      %513 = vmatprep.subr.bf16.mxu0 0
      %514 = vmatpush2.bf16.msra.mxu0 0
      %515 = vmatprep.subr.bf16.mxu0 0
      %516 = vmatpush2.bf16.msra.mxu0 0
      %517 = vmatprep.subr.bf16.mxu0 0
      %518 = vmatpush2.bf16.msra.mxu0 0
      %519 = vmatprep.subr.bf16.mxu0 0
      %520 = vmatpush2.bf16.msra.mxu0 0
      %521 = vmatprep.subr.bf16.mxu0 0
      %522 = vmatpush2.bf16.msra.mxu0 0
      %523 = vmatprep.subr.bf16.mxu0 0
      %524 = vmatpush2.bf16.msra.mxu0 0
      %525 = vmatprep.mubr.bf16.mxu0 0
      %526 = vmatmul.mubr.bf16.gmra.mxu0 %v440
      %v527 = vpop.f32.mrf.mxu0
      %v528 = vadd.f32 0.0, %v527
      %v529 = vpop.f32.mrf.mxu0
      %v530 = vpop.f32.mrf.mxu0
      %v531 = vpop.f32.mrf.mxu0
      %532 = vdwg.mxu0
      %v534 = vlaneseq
      %v535 = vshrl.u32 %v534, 7
      %v536 = vsub.s32 0, %v535
      %v537 = vrot.slane %v318, %v536
      %v538 = vlaneseq
      %v539 = vshrl.u32 %v538, 7
      %v540 = vsub.s32 1, %v539
      %v541 = vrot.slane %v318, %v540
      %v542 = vlaneseq
      %v543 = vshrl.u32 %v542, 7
      %v544 = vsub.s32 2, %v543
      %v545 = vrot.slane %v318, %v544
      %v549 = vmul.f32 %v487, %v537
      %v550 = vmul.f32 %v489, %v541
      %v551 = vmul.f32 %v528, %v545
      %v552 = vadd.f32 %v549, %v550
      %vm553 = vcmask 556032
      %v554 = vsel %vm553, %v551, 0.0
      %v555 = vadd.f32 %v552, %v554
      %556 = vadd.xlane.f32.xlu0 %v555
      %v557 = vpop.xlane.xlu0 %556
      %v558 = vmul.f32 %v557, 0.00390625
      %v559 = vsub.f32 %v487, %v558
      %v560 = vsub.f32 %v489, %v558
      %v561 = vsub.f32 %v528, %v558
      %v562 = vmul.f32 %v559, %v537
      %v563 = vmul.f32 %v560, %v541
      %v564 = vmul.f32 %v561, %v545
      %v565 = vmul.f32 %v562, %v562
      %v566 = vmul.f32 %v563, %v563
      %v567 = vmul.f32 %v564, %v564
      %v568 = vadd.f32 %v565, %v566
      %v569 = vsel %vm553, %v567, 0.0
      %v570 = vadd.f32 %v568, %v569
      %571 = vadd.xlane.f32.xlu0 %v570
      %v572 = vpop.xlane.xlu0 %571
      %v573 = vmul.f32 %v572, 0.00390625
      %v574 = vadd.f32 %v573, 1e-05
      %v575 = vrsqrt.pop %v574
      %v576 = vmul.f32 %v562, %v575
      %v577 = vmul.f32 %v563, %v575
      %v578 = vmul.f32 %v564, %v575
      %v579 = vld [vmem:[%s2] sm:$0xf]
      %583 = vrot.lane.b32.xlu0 %v576, 127
      %v584 = vpop.permute.xlu0 %583
      %585 = vrot.lane.b32.xlu0 %v577, 127
      %v586 = vpop.permute.xlu0 %585
      %587 = vrot.lane.b32.xlu0 %v578, 127
      %v588 = vpop.permute.xlu0 %587
      %v589 = vsel %vm333, %v584, %v586
      %v590 = vsel %vm333, %v586, %v588
      %594 = vrot.lane.b32.xlu0 %v576, 126
      %v595 = vpop.permute.xlu0 %594
      %596 = vrot.lane.b32.xlu0 %v577, 126
      %v597 = vpop.permute.xlu0 %596
      %598 = vrot.lane.b32.xlu0 %v578, 126
      %v599 = vpop.permute.xlu0 %598
      %v600 = vsel %vm345, %v595, %v597
      %v601 = vsel %vm345, %v597, %v599
      %605 = vrot.lane.b32.xlu0 %v576, 110
      %v606 = vpop.permute.xlu0 %605
      %607 = vrot.lane.b32.xlu0 %v577, 110
      %v608 = vpop.permute.xlu0 %607
      %609 = vrot.lane.b32.xlu0 %v578, 110
      %v610 = vpop.permute.xlu0 %609
      %v611 = vsel %vm357, %v606, %v608
      %v612 = vsel %vm357, %v608, %v610
      %616 = vrot.lane.b32.xlu0 %v576, 109
      %v617 = vpop.permute.xlu0 %616
      %618 = vrot.lane.b32.xlu0 %v577, 109
      %v619 = vpop.permute.xlu0 %618
      %620 = vrot.lane.b32.xlu0 %v578, 109
      %v621 = vpop.permute.xlu0 %620
      %v622 = vsel %vm369, %v617, %v619
      %v623 = vsel %vm369, %v619, %v621
      %627 = vrot.lane.b32.xlu0 %v576, 108
      %v628 = vpop.permute.xlu0 %627
      %629 = vrot.lane.b32.xlu0 %v577, 108
      %v630 = vpop.permute.xlu0 %629
      %631 = vrot.lane.b32.xlu0 %v578, 108
      %v632 = vpop.permute.xlu0 %631
      %v633 = vsel %vm381, %v628, %v630
      %v634 = vsel %vm381, %v630, %v632
      %638 = vrot.lane.b32.xlu0 %v576, 92
      %v639 = vpop.permute.xlu0 %638
      %640 = vrot.lane.b32.xlu0 %v577, 92
      %v641 = vpop.permute.xlu0 %640
      %642 = vrot.lane.b32.xlu0 %v578, 92
      %v643 = vpop.permute.xlu0 %642
      %v644 = vsel %vm393, %v639, %v641
      %v645 = vsel %vm393, %v641, %v643
      %649 = vrot.lane.b32.xlu0 %v576, 91
      %v650 = vpop.permute.xlu0 %649
      %651 = vrot.lane.b32.xlu0 %v577, 91
      %v652 = vpop.permute.xlu0 %651
      %653 = vrot.lane.b32.xlu0 %v578, 91
      %v654 = vpop.permute.xlu0 %653
      %v655 = vsel %vm405, %v650, %v652
      %v656 = vsel %vm405, %v652, %v654
      %660 = vrot.lane.b32.xlu0 %v576, 90
      %v661 = vpop.permute.xlu0 %660
      %662 = vrot.lane.b32.xlu0 %v577, 90
      %v663 = vpop.permute.xlu0 %662
      %664 = vrot.lane.b32.xlu0 %v578, 90
      %v665 = vpop.permute.xlu0 %664
      %v666 = vsel %vm417, %v661, %v663
      %v667 = vsel %vm417, %v663, %v665
      %v671 = vpack.c.bf16 %v589, %v576
      %v672 = vpack.c.bf16 %v590, %v577
      %v673 = vpack.c.bf16 %v588, %v578
      %v674 = vpack.c.bf16 %v611, %v600
      %v675 = vpack.c.bf16 %v612, %v601
      %v676 = vpack.c.bf16 %v610, %v599
      %v677 = vpack.c.bf16 %v633, %v622
      %v678 = vpack.c.bf16 %v634, %v623
      %v679 = vpack.c.bf16 %v632, %v621
      %v680 = vpack.c.bf16 %v655, %v644
      %v681 = vpack.c.bf16 %v656, %v645
      %v682 = vpack.c.bf16 %v654, %v643
      %v683 = vpack.c.bf16 %v666, %v666
      %v684 = vpack.c.bf16 %v667, %v667
      %v685 = vpack.c.bf16 %v665, %v665
      %v687 = vsel %vm438, %v579, 0
      %v690 = vsel %vm442, %v683, 0
      %v693 = vsel %vm442, %v684, 0
      %v696 = vsel %vm442, %v685, 0
      %698 = vmatprep.subr.bf16.mxu0 0
      %699 = vmatpush1.bf16.msra.mxu0 0
      %700 = vmatprep.subr.bf16.mxu0 0
      %701 = vmatpush1.bf16.msra.mxu0 0
      %702 = vmatprep.subr.bf16.mxu0 0
      %703 = vmatpush1.bf16.msra.mxu0 0
      %704 = vmatprep.subr.bf16.mxu0 %v693
      %705 = vmatpush1.bf16.msra.mxu0 %v690
      %706 = vmatprep.subr.bf16.mxu0 %v681
      %707 = vmatpush1.bf16.msra.mxu0 %v680
      %708 = vmatprep.subr.bf16.mxu0 %v678
      %709 = vmatpush1.bf16.msra.mxu0 %v677
      %710 = vmatprep.subr.bf16.mxu0 %v675
      %711 = vmatpush1.bf16.msra.mxu0 %v674
      %712 = vmatprep.subr.bf16.mxu0 %v672
      %713 = vmatpush1.bf16.msra.mxu0 %v671
      %714 = vmatprep.subr.bf16.mxu0 0
      %715 = vmatpush2.bf16.msra.mxu0 0
      %716 = vmatprep.subr.bf16.mxu0 0
      %717 = vmatpush2.bf16.msra.mxu0 0
      %718 = vmatprep.subr.bf16.mxu0 0
      %719 = vmatpush2.bf16.msra.mxu0 0
      %720 = vmatprep.subr.bf16.mxu0 0
      %721 = vmatpush2.bf16.msra.mxu0 0
      %722 = vmatprep.subr.bf16.mxu0 0
      %723 = vmatpush2.bf16.msra.mxu0 0
      %724 = vmatprep.subr.bf16.mxu0 0
      %725 = vmatpush2.bf16.msra.mxu0 0
      %726 = vmatprep.subr.bf16.mxu0 0
      %727 = vmatpush2.bf16.msra.mxu0 0
      %728 = vmatprep.subr.bf16.mxu0 0
      %729 = vmatpush2.bf16.msra.mxu0 0
      %730 = vmatprep.mubr.bf16.mxu0 0
      %731 = vmatmul.mubr.bf16.gmra.mxu0 %v687
      %v732 = vpop.f32.mrf.mxu0
      %v733 = vadd.f32 0.0, %v732
      %v734 = vpop.f32.mrf.mxu0
      %v735 = vadd.f32 0.0, %v734
      %v736 = vpop.f32.mrf.mxu0
      %v737 = vpop.f32.mrf.mxu0
      %738 = vdwg.mxu0
      %739 = vmatprep.subr.bf16.mxu0 0
      %740 = vmatpush1.bf16.msra.mxu0 0
      %741 = vmatprep.subr.bf16.mxu0 0
      %742 = vmatpush1.bf16.msra.mxu0 0
      %743 = vmatprep.subr.bf16.mxu0 0
      %744 = vmatpush1.bf16.msra.mxu0 0
      %745 = vmatprep.subr.bf16.mxu0 0
      %746 = vmatpush1.bf16.msra.mxu0 %v696
      %747 = vmatprep.subr.bf16.mxu0 0
      %748 = vmatpush1.bf16.msra.mxu0 %v682
      %749 = vmatprep.subr.bf16.mxu0 0
      %750 = vmatpush1.bf16.msra.mxu0 %v679
      %751 = vmatprep.subr.bf16.mxu0 0
      %752 = vmatpush1.bf16.msra.mxu0 %v676
      %753 = vmatprep.subr.bf16.mxu0 0
      %754 = vmatpush1.bf16.msra.mxu0 %v673
      %755 = vmatprep.subr.bf16.mxu0 0
      %756 = vmatpush2.bf16.msra.mxu0 0
      %757 = vmatprep.subr.bf16.mxu0 0
      %758 = vmatpush2.bf16.msra.mxu0 0
      %759 = vmatprep.subr.bf16.mxu0 0
      %760 = vmatpush2.bf16.msra.mxu0 0
      %761 = vmatprep.subr.bf16.mxu0 0
      %762 = vmatpush2.bf16.msra.mxu0 0
      %763 = vmatprep.subr.bf16.mxu0 0
      %764 = vmatpush2.bf16.msra.mxu0 0
      %765 = vmatprep.subr.bf16.mxu0 0
      %766 = vmatpush2.bf16.msra.mxu0 0
      %767 = vmatprep.subr.bf16.mxu0 0
      %768 = vmatpush2.bf16.msra.mxu0 0
      %769 = vmatprep.subr.bf16.mxu0 0
      %770 = vmatpush2.bf16.msra.mxu0 0
      %771 = vmatprep.mubr.bf16.mxu0 0
      %772 = vmatmul.mubr.bf16.gmra.mxu0 %v687
      %v773 = vpop.f32.mrf.mxu0
      %v774 = vadd.f32 0.0, %v773
      %v775 = vpop.f32.mrf.mxu0
      %v776 = vpop.f32.mrf.mxu0
      %v777 = vpop.f32.mrf.mxu0
      %778 = vdwg.mxu0
      %v780 = vlaneseq
      %v781 = vshrl.u32 %v780, 7
      %v782 = vsub.s32 0, %v781
      %v783 = vrot.slane %v319, %v782
      %v784 = vlaneseq
      %v785 = vshrl.u32 %v784, 7
      %v786 = vsub.s32 1, %v785
      %v787 = vrot.slane %v319, %v786
      %v788 = vlaneseq
      %v789 = vshrl.u32 %v788, 7
      %v790 = vsub.s32 2, %v789
      %v791 = vrot.slane %v319, %v790
      %v795 = vmul.f32 %v733, %v783
      %v796 = vmul.f32 %v735, %v787
      %v797 = vmul.f32 %v774, %v791
      %v798 = vadd.f32 %v795, %v796
      %vm799 = vcmask 244736
      %v800 = vsel %vm799, %v797, 0.0
      %v801 = vadd.f32 %v798, %v800
      %802 = vadd.xlane.f32.xlu0 %v801
      %v803 = vpop.xlane.xlu0 %802
      %v804 = vmul.f32 %v803, 0.00390625
      %v805 = vsub.f32 %v733, %v804
      %v806 = vsub.f32 %v735, %v804
      %v807 = vsub.f32 %v774, %v804
      %v808 = vmul.f32 %v805, %v783
      %v809 = vmul.f32 %v806, %v787
      %v810 = vmul.f32 %v807, %v791
      %v811 = vmul.f32 %v808, %v808
      %v812 = vmul.f32 %v809, %v809
      %v813 = vmul.f32 %v810, %v810
      %v814 = vadd.f32 %v811, %v812
      %v815 = vsel %vm799, %v813, 0.0
      %v816 = vadd.f32 %v814, %v815
      %817 = vadd.xlane.f32.xlu0 %v816
      %v818 = vpop.xlane.xlu0 %817
      %v819 = vmul.f32 %v818, 0.00390625
      %v820 = vadd.f32 %v819, 1e-05
      %v821 = vrsqrt.pop %v820
      %v822 = vmul.f32 %v808, %v821
      %v823 = vmul.f32 %v809, %v821
      %v824 = vmul.f32 %v810, %v821
      %v825 = vld [vmem:[%s5] sm:$0xff]
      %v826 = vld [vmem:[%s5 + $0x8] sm:$0xff]
      %v827 = vld [vmem:[%s5 + $0x10] sm:$0xff]
      %v828 = vld [vmem:[%s5 + $0x18] sm:$0xff]
      %v829 = vld [vmem:[%s5 + $0x20] sm:$0xff]
      %v830 = vld [vmem:[%s5 + $0x28] sm:$0xff]
      %v831 = vld [vmem:[%s5 + $0x30] sm:$0xff]
      %v832 = vld [vmem:[%s5 + $0x38] sm:$0xff]
      %v833 = vld [vmem:[%s5 + $0x40] sm:$0xff]
      %v834 = vld [vmem:[%s5 + $0x48] sm:$0xff]
      %v835 = vld [vmem:[%s5 + $0x50] sm:$0xff]
      %v836 = vld [vmem:[%s5 + $0x58] sm:$0xff]
      %v837 = vld [vmem:[%s5 + $0x60] sm:$0xff]
      %v838 = vld [vmem:[%s5 + $0x68] sm:$0xff]
      %v839 = vld [vmem:[%s5 + $0x70] sm:$0xff]
      %v840 = vld [vmem:[%s5 + $0x78] sm:$0xff]
      %v841 = vld [vmem:[%s5 + $0x80] sm:$0xff]
      %v842 = vld [vmem:[%s5 + $0x88] sm:$0xff]
      %v843 = vld [vmem:[%s5 + $0x90] sm:$0xff]
      %v844 = vld [vmem:[%s5 + $0x98] sm:$0xff]
      %v845 = vld [vmem:[%s5 + $0xa0] sm:$0xff]
      %v846 = vld [vmem:[%s5 + $0xa8] sm:$0xff]
      %v847 = vld [vmem:[%s5 + $0xb0] sm:$0xff]
      %v848 = vld [vmem:[%s5 + $0xb8] sm:$0xff]
      %v849 = vld [vmem:[%s5 + $0xc0] sm:$0xff]
      %v850 = vld [vmem:[%s5 + $0xc8] sm:$0xff]
      %v851 = vld [vmem:[%s5 + $0xd0] sm:$0xff]
      %v852 = vld [vmem:[%s5 + $0xd8] sm:$0xff]
      %v853 = vld [vmem:[%s5 + $0xe0] sm:$0xff]
      %v854 = vld [vmem:[%s5 + $0xe8] sm:$0xff]
      %v855 = vld [vmem:[%s5 + $0xf0] sm:$0xff]
      %v856 = vld [vmem:[%s5 + $0xf8] sm:$0xff]
      %v857 = vld [vmem:[%s5 + $0x100] sm:$0xff]
      %v858 = vld [vmem:[%s5 + $0x108] sm:$0xff]
      %v859 = vld [vmem:[%s5 + $0x110] sm:$0xff]
      %v860 = vld [vmem:[%s5 + $0x118] sm:$0xff]
      %v861 = vld [vmem:[%s5 + $0x120] sm:$0xff]
      %v862 = vld [vmem:[%s5 + $0x128] sm:$0xff]
      %v863 = vld [vmem:[%s5 + $0x130] sm:$0xff]
      %v864 = vld [vmem:[%s5 + $0x138] sm:$0xff]
      %v865 = vld [vmem:[%s5 + $0x140] sm:$0xff]
      %v866 = vld [vmem:[%s5 + $0x148] sm:$0xff]
      %v867 = vld [vmem:[%s5 + $0x150] sm:$0xff]
      %v868 = vld [vmem:[%s5 + $0x158] sm:$0xff]
      %v869 = vld [vmem:[%s5 + $0x160] sm:$0xff]
      %v870 = vld [vmem:[%s5 + $0x168] sm:$0xff]
      %v871 = vld [vmem:[%s5 + $0x170] sm:$0xff]
      %v872 = vld [vmem:[%s5 + $0x178] sm:$0xff]
      %v873 = vld [vmem:[%s5 + $0x180] sm:$0xff]
      %v874 = vld [vmem:[%s5 + $0x188] sm:$0xff]
      %v875 = vld [vmem:[%s5 + $0x190] sm:$0xff]
      %v876 = vld [vmem:[%s5 + $0x198] sm:$0xff]
      %v877 = vld [vmem:[%s5 + $0x1a0] sm:$0xff]
      %v878 = vld [vmem:[%s5 + $0x1a8] sm:$0xff]
      %v879 = vld [vmem:[%s5 + $0x1b0] sm:$0xff]
      %v880 = vld [vmem:[%s5 + $0x1b8] sm:$0xff]
      %v881 = vld [vmem:[%s5 + $0x1c0] sm:$0xff]
      %v882 = vld [vmem:[%s5 + $0x1c8] sm:$0xff]
      %v883 = vld [vmem:[%s5 + $0x1d0] sm:$0xff]
      %v884 = vld [vmem:[%s5 + $0x1d8] sm:$0xff]
      %v885 = vld [vmem:[%s5 + $0x1e0] sm:$0xff]
      %v886 = vld [vmem:[%s5 + $0x1e8] sm:$0xff]
      %v887 = vld [vmem:[%s5 + $0x1f0] sm:$0xff]
      %v888 = vld [vmem:[%s5 + $0x1f8] sm:$0xff]
      %v889 = vld [vmem:[%s5 + $0x200] sm:$0xff]
      %v890 = vld [vmem:[%s5 + $0x208] sm:$0xff]
      %v891 = vld [vmem:[%s5 + $0x210] sm:$0xff]
      %v892 = vld [vmem:[%s5 + $0x218] sm:$0xff]
      %v893 = vld [vmem:[%s5 + $0x220] sm:$0xff]
      %v894 = vld [vmem:[%s5 + $0x228] sm:$0xff]
      %v895 = vld [vmem:[%s5 + $0x230] sm:$0x3f]
      %v896 = vld [vmem:[%s5 + $0x238] sm:$0x3f]
      %v898 = vsel %vm799, %v824, 0
      %vm900 = vcmask 1045504
      %v902 = vsel %vm900, %v895, 0
      %v905 = vsel %vm900, %v896, 0
      %907 = vmatprep.subr.mxu0 %v856
      %908 = vmatpush1.msra.mxu0 %v855
      %909 = vmatprep.subr.mxu0 %v854
      %910 = vmatpush1.msra.mxu0 %v853
      %911 = vmatprep.subr.mxu0 %v852
      %912 = vmatpush1.msra.mxu0 %v851
      %913 = vmatprep.subr.mxu0 %v850
      %914 = vmatpush1.msra.mxu0 %v849
      %915 = vmatprep.subr.mxu0 %v848
      %916 = vmatpush1.msra.mxu0 %v847
      %917 = vmatprep.subr.mxu0 %v846
      %918 = vmatpush1.msra.mxu0 %v845
      %919 = vmatprep.subr.mxu0 %v844
      %920 = vmatpush1.msra.mxu0 %v843
      %921 = vmatprep.subr.mxu0 %v842
      %922 = vmatpush1.msra.mxu0 %v841
      %923 = vmatprep.subr.mxu0 %v840
      %924 = vmatpush1.msra.mxu0 %v839
      %925 = vmatprep.subr.mxu0 %v838
      %926 = vmatpush1.msra.mxu0 %v837
      %927 = vmatprep.subr.mxu0 %v836
      %928 = vmatpush1.msra.mxu0 %v835
      %929 = vmatprep.subr.mxu0 %v834
      %930 = vmatpush1.msra.mxu0 %v833
      %931 = vmatprep.subr.mxu0 %v832
      %932 = vmatpush1.msra.mxu0 %v831
      %933 = vmatprep.subr.mxu0 %v830
      %934 = vmatpush1.msra.mxu0 %v829
      %935 = vmatprep.subr.mxu0 %v828
      %936 = vmatpush1.msra.mxu0 %v827
      %937 = vmatprep.subr.mxu0 %v826
      %938 = vmatpush1.msra.mxu0 %v825
      %939 = vmatprep.subr.mxu0 %v888
      %940 = vmatpush2.msra.mxu0 %v887
      %941 = vmatprep.subr.mxu0 %v886
      %942 = vmatpush2.msra.mxu0 %v885
      %943 = vmatprep.subr.mxu0 %v884
      %944 = vmatpush2.msra.mxu0 %v883
      %945 = vmatprep.subr.mxu0 %v882
      %946 = vmatpush2.msra.mxu0 %v881
      %947 = vmatprep.subr.mxu0 %v880
      %948 = vmatpush2.msra.mxu0 %v879
      %949 = vmatprep.subr.mxu0 %v878
      %950 = vmatpush2.msra.mxu0 %v877
      %951 = vmatprep.subr.mxu0 %v876
      %952 = vmatpush2.msra.mxu0 %v875
      %953 = vmatprep.subr.mxu0 %v874
      %954 = vmatpush2.msra.mxu0 %v873
      %955 = vmatprep.subr.mxu0 %v872
      %956 = vmatpush2.msra.mxu0 %v871
      %957 = vmatprep.subr.mxu0 %v870
      %958 = vmatpush2.msra.mxu0 %v869
      %959 = vmatprep.subr.mxu0 %v868
      %960 = vmatpush2.msra.mxu0 %v867
      %961 = vmatprep.subr.mxu0 %v866
      %962 = vmatpush2.msra.mxu0 %v865
      %963 = vmatprep.subr.mxu0 %v864
      %964 = vmatpush2.msra.mxu0 %v863
      %965 = vmatprep.subr.mxu0 %v862
      %966 = vmatpush2.msra.mxu0 %v861
      %967 = vmatprep.subr.mxu0 %v860
      %968 = vmatpush2.msra.mxu0 %v859
      %969 = vmatprep.subr.mxu0 %v858
      %970 = vmatpush2.msra.mxu0 %v857
      %971 = vmatprep.mubr.f32.mxu0 %v823
      %972 = vmatmul.mubr.f32.gmra.mxu0 %v822
      %v973 = vpop.f32.mrf.mxu0
      %v974 = vadd.f32 0.0, %v973
      %v975 = vpop.f32.mrf.mxu0
      %v976 = vadd.f32 0.0, %v975
      %977 = vdwg.mxu0
      %978 = vmatprep.subr.mxu0 0.0
      %979 = vmatpush1.msra.mxu0 0.0
      %980 = vmatprep.subr.mxu0 0.0
      %981 = vmatpush1.msra.mxu0 0.0
      %982 = vmatprep.subr.mxu0 0.0
      %983 = vmatpush1.msra.mxu0 0.0
      %984 = vmatprep.subr.mxu0 0.0
      %985 = vmatpush1.msra.mxu0 0.0
      %986 = vmatprep.subr.mxu0 0.0
      %987 = vmatpush1.msra.mxu0 0.0
      %988 = vmatprep.subr.mxu0 0.0
      %989 = vmatpush1.msra.mxu0 0.0
      %990 = vmatprep.subr.mxu0 0.0
      %991 = vmatpush1.msra.mxu0 0.0
      %992 = vmatprep.subr.mxu0 0.0
      %993 = vmatpush1.msra.mxu0 0.0
      %994 = vmatprep.subr.mxu0 0.0
      %995 = vmatpush1.msra.mxu0 0.0
      %996 = vmatprep.subr.mxu0 0.0
      %997 = vmatpush1.msra.mxu0 0.0
      %998 = vmatprep.subr.mxu0 0.0
      %999 = vmatpush1.msra.mxu0 0.0
      %1000 = vmatprep.subr.mxu0 0.0
      %1001 = vmatpush1.msra.mxu0 0.0
      %1002 = vmatprep.subr.mxu0 %v905
      %1003 = vmatpush1.msra.mxu0 %v902
      %1004 = vmatprep.subr.mxu0 %v894
      %1005 = vmatpush1.msra.mxu0 %v893
      %1006 = vmatprep.subr.mxu0 %v892
      %1007 = vmatpush1.msra.mxu0 %v891
      %1008 = vmatprep.subr.mxu0 %v890
      %1009 = vmatpush1.msra.mxu0 %v889
      %1010 = vmatprep.subr.mxu0 0.0
      %1011 = vmatpush2.msra.mxu0 0.0
      %1012 = vmatprep.subr.mxu0 0.0
      %1013 = vmatpush2.msra.mxu0 0.0
      %1014 = vmatprep.subr.mxu0 0.0
      %1015 = vmatpush2.msra.mxu0 0.0
      %1016 = vmatprep.subr.mxu0 0.0
      %1017 = vmatpush2.msra.mxu0 0.0
      %1018 = vmatprep.subr.mxu0 0.0
      %1019 = vmatpush2.msra.mxu0 0.0
      %1020 = vmatprep.subr.mxu0 0.0
      %1021 = vmatpush2.msra.mxu0 0.0
      %1022 = vmatprep.subr.mxu0 0.0
      %1023 = vmatpush2.msra.mxu0 0.0
      %1024 = vmatprep.subr.mxu0 0.0
      %1025 = vmatpush2.msra.mxu0 0.0
      %1026 = vmatprep.subr.mxu0 0.0
      %1027 = vmatpush2.msra.mxu0 0.0
      %1028 = vmatprep.subr.mxu0 0.0
      %1029 = vmatpush2.msra.mxu0 0.0
      %1030 = vmatprep.subr.mxu0 0.0
      %1031 = vmatpush2.msra.mxu0 0.0
      %1032 = vmatprep.subr.mxu0 0.0
      %1033 = vmatpush2.msra.mxu0 0.0
      %1034 = vmatprep.subr.mxu0 0.0
      %1035 = vmatpush2.msra.mxu0 0.0
      %1036 = vmatprep.subr.mxu0 0.0
      %1037 = vmatpush2.msra.mxu0 0.0
      %1038 = vmatprep.subr.mxu0 0.0
      %1039 = vmatpush2.msra.mxu0 0.0
      %1040 = vmatprep.subr.mxu0 0.0
      %1041 = vmatpush2.msra.mxu0 0.0
      %1042 = vmatprep.mubr.f32.mxu0 0.0
      %1043 = vmatmul.mubr.f32.gmra.mxu0 %v898
      %v1044 = vpop.f32.mrf.mxu0
      %v1045 = vadd.f32 %v974, %v1044
      %v1046 = vpop.f32.mrf.mxu0
      %v1047 = vadd.f32 %v976, %v1046
      %1048 = vdwg.mxu0
      %1049 = vst [vmem:[%s312] sm:$0xff] %v1045
      %1050 = vst [vmem:[%s312 + $0x8] sm:$0xff] %v1047
      %v1051 = vld [vmem:[%s6] sm:$0xff]
      %v1052 = vld [vmem:[%s6 + $0x8] sm:$0xff]
      %v1053 = vld [vmem:[%s6 + $0x10] sm:$0xff]
      %v1054 = vld [vmem:[%s6 + $0x18] sm:$0xff]
      %v1055 = vld [vmem:[%s6 + $0x20] sm:$0xff]
      %v1056 = vld [vmem:[%s6 + $0x28] sm:$0xff]
      %v1057 = vld [vmem:[%s6 + $0x30] sm:$0xff]
      %v1058 = vld [vmem:[%s6 + $0x38] sm:$0xff]
      %v1059 = vld [vmem:[%s6 + $0x40] sm:$0xff]
      %v1060 = vld [vmem:[%s6 + $0x48] sm:$0xff]
      %v1061 = vld [vmem:[%s6 + $0x50] sm:$0xff]
      %v1062 = vld [vmem:[%s6 + $0x58] sm:$0xff]
      %v1063 = vld [vmem:[%s6 + $0x60] sm:$0xff]
      %v1064 = vld [vmem:[%s6 + $0x68] sm:$0xff]
      %v1065 = vld [vmem:[%s6 + $0x70] sm:$0xff]
      %v1066 = vld [vmem:[%s6 + $0x78] sm:$0xff]
      %v1067 = vld [vmem:[%s6 + $0x80] sm:$0xff]
      %v1068 = vld [vmem:[%s6 + $0x88] sm:$0xff]
      %v1069 = vld [vmem:[%s6 + $0x90] sm:$0xff]
      %v1070 = vld [vmem:[%s6 + $0x98] sm:$0xff]
      %v1071 = vld [vmem:[%s6 + $0xa0] sm:$0xff]
      %v1072 = vld [vmem:[%s6 + $0xa8] sm:$0xff]
      %v1073 = vld [vmem:[%s6 + $0xb0] sm:$0xff]
      %v1074 = vld [vmem:[%s6 + $0xb8] sm:$0xff]
      %v1075 = vld [vmem:[%s6 + $0xc0] sm:$0xff]
      %v1076 = vld [vmem:[%s6 + $0xc8] sm:$0xff]
      %v1077 = vld [vmem:[%s6 + $0xd0] sm:$0xff]
      %v1078 = vld [vmem:[%s6 + $0xd8] sm:$0xff]
      %v1079 = vld [vmem:[%s6 + $0xe0] sm:$0xff]
      %v1080 = vld [vmem:[%s6 + $0xe8] sm:$0xff]
      %v1081 = vld [vmem:[%s6 + $0xf0] sm:$0xff]
      %v1082 = vld [vmem:[%s6 + $0xf8] sm:$0xff]
      %v1083 = vld [vmem:[%s6 + $0x100] sm:$0xff]
      %v1084 = vld [vmem:[%s6 + $0x108] sm:$0xff]
      %v1085 = vld [vmem:[%s6 + $0x110] sm:$0xff]
      %v1086 = vld [vmem:[%s6 + $0x118] sm:$0x3f]
      %v1088 = vsel %vm900, %v1086, 0
      %1090 = vmatprep.subr.mxu0 0.0
      %1091 = vmatpush1.msra.mxu0 %v1066
      %1092 = vmatprep.subr.mxu0 0.0
      %1093 = vmatpush1.msra.mxu0 %v1065
      %1094 = vmatprep.subr.mxu0 0.0
      %1095 = vmatpush1.msra.mxu0 %v1064
      %1096 = vmatprep.subr.mxu0 0.0
      %1097 = vmatpush1.msra.mxu0 %v1063
      %1098 = vmatprep.subr.mxu0 0.0
      %1099 = vmatpush1.msra.mxu0 %v1062
      %1100 = vmatprep.subr.mxu0 0.0
      %1101 = vmatpush1.msra.mxu0 %v1061
      %1102 = vmatprep.subr.mxu0 0.0
      %1103 = vmatpush1.msra.mxu0 %v1060
      %1104 = vmatprep.subr.mxu0 0.0
      %1105 = vmatpush1.msra.mxu0 %v1059
      %1106 = vmatprep.subr.mxu0 0.0
      %1107 = vmatpush1.msra.mxu0 %v1058
      %1108 = vmatprep.subr.mxu0 0.0
      %1109 = vmatpush1.msra.mxu0 %v1057
      %1110 = vmatprep.subr.mxu0 0.0
      %1111 = vmatpush1.msra.mxu0 %v1056
      %1112 = vmatprep.subr.mxu0 0.0
      %1113 = vmatpush1.msra.mxu0 %v1055
      %1114 = vmatprep.subr.mxu0 0.0
      %1115 = vmatpush1.msra.mxu0 %v1054
      %1116 = vmatprep.subr.mxu0 0.0
      %1117 = vmatpush1.msra.mxu0 %v1053
      %1118 = vmatprep.subr.mxu0 0.0
      %1119 = vmatpush1.msra.mxu0 %v1052
      %1120 = vmatprep.subr.mxu0 0.0
      %1121 = vmatpush1.msra.mxu0 %v1051
      %1122 = vmatprep.subr.mxu0 0.0
      %1123 = vmatpush2.msra.mxu0 %v1082
      %1124 = vmatprep.subr.mxu0 0.0
      %1125 = vmatpush2.msra.mxu0 %v1081
      %1126 = vmatprep.subr.mxu0 0.0
      %1127 = vmatpush2.msra.mxu0 %v1080
      %1128 = vmatprep.subr.mxu0 0.0
      %1129 = vmatpush2.msra.mxu0 %v1079
      %1130 = vmatprep.subr.mxu0 0.0
      %1131 = vmatpush2.msra.mxu0 %v1078
      %1132 = vmatprep.subr.mxu0 0.0
      %1133 = vmatpush2.msra.mxu0 %v1077
      %1134 = vmatprep.subr.mxu0 0.0
      %1135 = vmatpush2.msra.mxu0 %v1076
      %1136 = vmatprep.subr.mxu0 0.0
      %1137 = vmatpush2.msra.mxu0 %v1075
      %1138 = vmatprep.subr.mxu0 0.0
      %1139 = vmatpush2.msra.mxu0 %v1074
      %1140 = vmatprep.subr.mxu0 0.0
      %1141 = vmatpush2.msra.mxu0 %v1073
      %1142 = vmatprep.subr.mxu0 0.0
      %1143 = vmatpush2.msra.mxu0 %v1072
      %1144 = vmatprep.subr.mxu0 0.0
      %1145 = vmatpush2.msra.mxu0 %v1071
      %1146 = vmatprep.subr.mxu0 0.0
      %1147 = vmatpush2.msra.mxu0 %v1070
      %1148 = vmatprep.subr.mxu0 0.0
      %1149 = vmatpush2.msra.mxu0 %v1069
      %1150 = vmatprep.subr.mxu0 0.0
      %1151 = vmatpush2.msra.mxu0 %v1068
      %1152 = vmatprep.subr.mxu0 0.0
      %1153 = vmatpush2.msra.mxu0 %v1067
      %1154 = vmatprep.mubr.f32.mxu0 %v823
      %1155 = vmatmul.mubr.f32.gmra.mxu0 %v822
      %v1156 = vpop.f32.mrf.mxu0
      %v1157 = vadd.f32 0.0, %v1156
      %v1158 = vpop.f32.mrf.mxu0
      %1159 = vdwg.mxu0
      %1160 = vmatprep.subr.mxu0 0.0
      %1161 = vmatpush1.msra.mxu0 0.0
      %1162 = vmatprep.subr.mxu0 0.0
      %1163 = vmatpush1.msra.mxu0 0.0
      %1164 = vmatprep.subr.mxu0 0.0
      %1165 = vmatpush1.msra.mxu0 0.0
      %1166 = vmatprep.subr.mxu0 0.0
      %1167 = vmatpush1.msra.mxu0 0.0
      %1168 = vmatprep.subr.mxu0 0.0
      %1169 = vmatpush1.msra.mxu0 0.0
      %1170 = vmatprep.subr.mxu0 0.0
      %1171 = vmatpush1.msra.mxu0 0.0
      %1172 = vmatprep.subr.mxu0 0.0
      %1173 = vmatpush1.msra.mxu0 0.0
      %1174 = vmatprep.subr.mxu0 0.0
      %1175 = vmatpush1.msra.mxu0 0.0
      %1176 = vmatprep.subr.mxu0 0.0
      %1177 = vmatpush1.msra.mxu0 0.0
      %1178 = vmatprep.subr.mxu0 0.0
      %1179 = vmatpush1.msra.mxu0 0.0
      %1180 = vmatprep.subr.mxu0 0.0
      %1181 = vmatpush1.msra.mxu0 0.0
      %1182 = vmatprep.subr.mxu0 0.0
      %1183 = vmatpush1.msra.mxu0 0.0
      %1184 = vmatprep.subr.mxu0 0.0
      %1185 = vmatpush1.msra.mxu0 %v1088
      %1186 = vmatprep.subr.mxu0 0.0
      %1187 = vmatpush1.msra.mxu0 %v1085
      %1188 = vmatprep.subr.mxu0 0.0
      %1189 = vmatpush1.msra.mxu0 %v1084
      %1190 = vmatprep.subr.mxu0 0.0
      %1191 = vmatpush1.msra.mxu0 %v1083
      %1192 = vmatprep.subr.mxu0 0.0
      %1193 = vmatpush2.msra.mxu0 0.0
      %1194 = vmatprep.subr.mxu0 0.0
      %1195 = vmatpush2.msra.mxu0 0.0
      %1196 = vmatprep.subr.mxu0 0.0
      %1197 = vmatpush2.msra.mxu0 0.0
      %1198 = vmatprep.subr.mxu0 0.0
      %1199 = vmatpush2.msra.mxu0 0.0
      %1200 = vmatprep.subr.mxu0 0.0
      %1201 = vmatpush2.msra.mxu0 0.0
      %1202 = vmatprep.subr.mxu0 0.0
      %1203 = vmatpush2.msra.mxu0 0.0
      %1204 = vmatprep.subr.mxu0 0.0
      %1205 = vmatpush2.msra.mxu0 0.0
      %1206 = vmatprep.subr.mxu0 0.0
      %1207 = vmatpush2.msra.mxu0 0.0
      %1208 = vmatprep.subr.mxu0 0.0
      %1209 = vmatpush2.msra.mxu0 0.0
      %1210 = vmatprep.subr.mxu0 0.0
      %1211 = vmatpush2.msra.mxu0 0.0
      %1212 = vmatprep.subr.mxu0 0.0
      %1213 = vmatpush2.msra.mxu0 0.0
      %1214 = vmatprep.subr.mxu0 0.0
      %1215 = vmatpush2.msra.mxu0 0.0
      %1216 = vmatprep.subr.mxu0 0.0
      %1217 = vmatpush2.msra.mxu0 0.0
      %1218 = vmatprep.subr.mxu0 0.0
      %1219 = vmatpush2.msra.mxu0 0.0
      %1220 = vmatprep.subr.mxu0 0.0
      %1221 = vmatpush2.msra.mxu0 0.0
      %1222 = vmatprep.subr.mxu0 0.0
      %1223 = vmatpush2.msra.mxu0 0.0
      %1224 = vmatprep.mubr.f32.mxu0 0.0
      %1225 = vmatmul.mubr.f32.gmra.mxu0 %v898
      %v1226 = vpop.f32.mrf.mxu0
      %v1227 = vadd.f32 %v1157, %v1226
      %v1228 = vpop.f32.mrf.mxu0
      %1229 = vdwg.mxu0
      %vm1230 = vcmask 998400
      %1231 = vst.msk [vmem:[%s316] sm:$0xff] %vm1230, %v1227
      %p1232 = scmp.lt.s32.totalorder %s20, 1
      %s1233 = scalar_select %p1232, %s20, 1
      %s1234 = smul.addr %s1233, 2
      %s1235 = smul.addr %s1234, 8
      %s1236 = scalar_lea.vmem %s7, %s1235
      %p1237 = scmp.lt.s32.totalorder %s20, 1
      %s1238 = scalar_select %p1237, %s20, 1
      %s1239 = smul.addr %s1238, 8
      %s1240 = scalar_lea.vmem %s8, %s1239
      // Predicated region
      $region49: #{forward.2} parent=47 // pred_check
        %p1241 = pneg %p190
      $region50: #{forward.2} parent=47 // pred_check_branch
        %1243 = sbr.rel (%p1241) target = $region52
      $region51: #{forward.2} parent=47 // pred_region
        _
      $region52: #{forward.2} parent=47 // pred_fallthru
        _
      // Predicated region
      $region53: #{forward.2} parent=47 // pred_check
        %p1244 = pneg %p216
      $region54: #{forward.2} parent=47 // pred_check_branch
        %1246 = sbr.rel (%p1244) target = $region56
      $region55: #{forward.2} parent=47 // pred_region
        _
      $region56: #{forward.2} parent=47 // pred_fallthru
        _
    $region48: #{forward.2} parent=5 // pred_fallthru
      _
    %p1247 = scmp.le.s32.totalorder 2, %s15
    // Predicated region
    $region57: #{forward.2} parent=5 // pred_check
      %p1248 = pneg %p1247
    $region58: #{forward.2} parent=5 // pred_check_branch
      %1250 = sbr.rel (%p1248) target = $region60
    $region59: #{forward.2} parent=5 // pred_region
      %s1251 = ssub.s32 %s15, 2
      // Predicated region
      $region61: #{forward.2} parent=59 // pred_check
        %p1252 = pneg %p196
      $region62: #{forward.2} parent=59 // pred_check_branch
        %1254 = sbr.rel (%p1252) target = $region64
      $region63: #{forward.2} parent=59 // pred_region
        %p1255 = scmp.lt.s32.totalorder %s21, 1
        %s1256 = scalar_select %p1255, %s21, 1
        %s1257 = smul.addr %s1256, 2
        %s1258 = smul.addr %s1257, 8
        %s1259 = scalar_lea.vmem %s7, %s1258
      $region64: #{forward.2} parent=59 // pred_fallthru
        _
      // Predicated region
      $region65: #{forward.2} parent=59 // pred_check
        %p1260 = pneg %p222
      $region66: #{forward.2} parent=59 // pred_check_branch
        %1262 = sbr.rel (%p1260) target = $region68
      $region67: #{forward.2} parent=59 // pred_region
        %p1263 = scmp.lt.s32.totalorder %s21, 1
        %s1264 = scalar_select %p1263, %s21, 1
        %s1265 = smul.addr %s1264, 8
        %s1266 = scalar_lea.vmem %s8, %s1265
      $region68: #{forward.2} parent=59 // pred_fallthru
        _
    $region60: #{forward.2} parent=5 // pred_fallthru
      _
  $region6: #{forward.2} parent=0 // loop_footer
    %s19 = sadd.s32 1, %s15
  $region7: #{forward.2} parent=0 // loop_footer_branch
    %14 = sbr.rel target = $region3
  $region8: #{forward.2} parent=0 // loop_exit
    _

</llo_original>
